<compile_context>
chip_gen: v7x
topology: tpu7x:2x2x1
jax: 0.10.0
libtpu: 0.0.40
codegen_flags: <defaults>
</compile_context>

<pallas_src>
import functools

import jax
import jax.numpy as jnp
from jax import lax
from jax.experimental import pallas as pl
from jax.experimental.pallas import tpu as pltpu

EPS = 1e-5
EXPANSION = 4
LANE = 128


def _tpu_vmem_bytes():
    try:
        return int(pltpu.get_tpu_info().vmem_capacity_bytes)
    except Exception:
        return 64 * 1024 * 1024  # conservative (v7x per-core)


_VMEM_BYTES = _tpu_vmem_bytes()
# v5e/v6e (128 MiB VMEM): big row tiles; v7x (64 MiB): medium; else conservative.
_ROW_TILE_CAP = 1024 if _VMEM_BYTES >= (100 << 20) else (512 if _VMEM_BYTES >= (48 << 20) else 256)
_VMEM_LIMIT = min(int(_VMEM_BYTES * 3 // 4), 96 * 1024 * 1024)


def _cparams(sems):
    return pltpu.CompilerParams(dimension_semantics=sems, vmem_limit_bytes=_VMEM_LIMIT)


# ----------------------------- Pallas kernels ------------------------------

def _bn_relu_mm_stats_kernel(x_ref, s_ref, b_ref, w_ref, o_ref, sum_ref, ssq_ref):
    """o = relu(x*scale+bias) @ W ; also emit per-block column sum and sum-of-squares."""
    a = jnp.maximum(x_ref[...].astype(jnp.float32) * s_ref[...] + b_ref[...], 0.0)
    t = jnp.dot(a.astype(w_ref.dtype), w_ref[...], preferred_element_type=jnp.float32)
    o_ref[...] = t.astype(o_ref.dtype)
    sum_ref[...] = jnp.sum(t, axis=0, keepdims=True).reshape(sum_ref.shape)
    ssq_ref[...] = jnp.sum(t * t, axis=0, keepdims=True).reshape(ssq_ref.shape)


def _mm_stats_acc_kernel(x_ref, w_ref, o_ref, sum_ref, ssq_ref, acc_ref):
    """o = x @ w with the K dimension split across grid axis 1 (f32 VMEM accumulator);
    per-block column sum / sumsq of the f32 result emitted at the last K step."""
    @pl.when(pl.program_id(1) == 0)
    def _():
        acc_ref[...] = jnp.zeros_like(acc_ref)

    acc_ref[...] += jnp.dot(x_ref[...], w_ref[...], preferred_element_type=jnp.float32)

    @pl.when(pl.program_id(1) == pl.num_programs(1) - 1)
    def _():
        t = acc_ref[...]
        o_ref[...] = t.astype(o_ref.dtype)
        sum_ref[...] = jnp.sum(t, axis=0, keepdims=True).reshape(sum_ref.shape)
        ssq_ref[...] = jnp.sum(t * t, axis=0, keepdims=True).reshape(ssq_ref.shape)


def _final_proj_kernel(t_ref, s3_ref, b3_ref, w3_ref, x_ref, s1_ref, b1_ref, wsc_ref, o_ref):
    """o = relu(t*s3+b3) @ W3 + relu(x*s1+b1) @ Wsc  (conv3 + projection shortcut)."""
    a3 = jnp.maximum(t_ref[...].astype(jnp.float32) * s3_ref[...] + b3_ref[...], 0.0)
    acc = jnp.dot(a3.astype(w3_ref.dtype), w3_ref[...], preferred_element_type=jnp.float32)
    ash = jnp.maximum(x_ref[...].astype(jnp.float32) * s1_ref[...] + b1_ref[...], 0.0)
    acc = acc + jnp.dot(ash.astype(wsc_ref.dtype), wsc_ref[...],
                        preferred_element_type=jnp.float32)
    o_ref[...] = acc.astype(o_ref.dtype)


def _final_ident_kernel(t_ref, s3_ref, b3_ref, w3_ref, x_ref, s1_ref, b1_ref, o_ref):
    """o = relu(t*s3+b3) @ W3 + relu(x*s1+b1)  (identity shortcut as a VPU add)."""
    a3 = jnp.maximum(t_ref[...].astype(jnp.float32) * s3_ref[...] + b3_ref[...], 0.0)
    acc = jnp.dot(a3.astype(w3_ref.dtype), w3_ref[...], preferred_element_type=jnp.float32)
    acc = acc + jnp.maximum(x_ref[...].astype(jnp.float32) * s1_ref[...] + b1_ref[...], 0.0)
    o_ref[...] = acc.astype(o_ref.dtype)


# ------------------------------ kernel wrappers -----------------------------

def _pick_row_tile(m, cap=_ROW_TILE_CAP):
    t = min(cap, m)
    t -= t % 8
    while t >= 8:
        if m % t == 0:
            return t
        t -= 8
    # TODO(synk): for row counts not divisible by 8, pad the rows and mask them out of
    # the in-kernel BN statistics instead of falling back to a single whole-array block.
    return m


def _pick_col_tile(n):
    if n <= 512:
        return n
    for t in (512, 384, 256, 128):
        if n % t == 0:
            return t
    return n


def fused_bn_relu_matmul(x2d, scale, bias, w, out_dtype):
    """(relu(x*scale+bias) @ w, per-block column sum, per-block column sumsq)."""
    m, k = x2d.shape
    cout = w.shape[1]
    tm = _pick_row_tile(m)
    g = m // tm
    return pl.pallas_call(
        _bn_relu_mm_stats_kernel,
        out_shape=(jax.ShapeDtypeStruct((m, cout), out_dtype),
                   jax.ShapeDtypeStruct((g, 1, cout), jnp.float32),
                   jax.ShapeDtypeStruct((g, 1, cout), jnp.float32)),
        grid=(g,),
        in_specs=[pl.BlockSpec((tm, k), lambda i: (i, 0)),
                  pl.BlockSpec((1, k), lambda i: (0, 0)),
                  pl.BlockSpec((1, k), lambda i: (0, 0)),
                  pl.BlockSpec((k, cout), lambda i: (0, 0))],
        out_specs=(pl.BlockSpec((tm, cout), lambda i: (i, 0)),
                   pl.BlockSpec((1, 1, cout), lambda i: (i, 0, 0)),
                   pl.BlockSpec((1, 1, cout), lambda i: (i, 0, 0))),
        compiler_params=_cparams(("parallel",)),
    )(x2d, scale, bias, w)


def fused_matmul_ksplit(x2d, w, ktile, out_dtype):
    """x @ w with K split into ktile-wide chunks on a reduction grid axis (+stats)."""
    m, ktot = x2d.shape
    cout = w.shape[1]
    nk = ktot // ktile
    tm = _pick_row_tile(m)
    g = m // tm
    return pl.pallas_call(
        _mm_stats_acc_kernel,
        out_shape=(jax.ShapeDtypeStruct((m, cout), out_dtype),
                   jax.ShapeDtypeStruct((g, 1, cout), jnp.float32),
                   jax.ShapeDtypeStruct((g, 1, cout), jnp.float32)),
        grid=(g, nk),
        in_specs=[pl.BlockSpec((tm, ktile), lambda i, k: (i, k)),
                  pl.BlockSpec((ktile, cout), lambda i, k: (k, 0))],
        out_specs=(pl.BlockSpec((tm, cout), lambda i, k: (i, 0)),
                   pl.BlockSpec((1, 1, cout), lambda i, k: (i, 0, 0)),
                   pl.BlockSpec((1, 1, cout), lambda i, k: (i, 0, 0))),
        scratch_shapes=[pltpu.VMEM((tm, cout), jnp.float32)],
        compiler_params=_cparams(("parallel", "arbitrary")),
    )(x2d, w)


def fused_final_proj(t2, s3, b3, w3, xs, s1, b1, wsc):
    m, k3 = t2.shape
    e = w3.shape[1]
    ks = xs.shape[1]
    tm = _pick_row_tile(m)
    tn = _pick_col_tile(e)
    return pl.pallas_call(
        _final_proj_kernel,
        out_shape=jax.ShapeDtypeStruct((m, e), jnp.float32),
        grid=(m // tm, e // tn),
        in_specs=[pl.BlockSpec((tm, k3), lambda i, j: (i, 0)),
                  pl.BlockSpec((1, k3), lambda i, j: (0, 0)),
                  pl.BlockSpec((1, k3), lambda i, j: (0, 0)),
                  pl.BlockSpec((k3, tn), lambda i, j: (0, j)),
                  pl.BlockSpec((tm, ks), lambda i, j: (i, 0)),
                  pl.BlockSpec((1, ks), lambda i, j: (0, 0)),
                  pl.BlockSpec((1, ks), lambda i, j: (0, 0)),
                  pl.BlockSpec((ks, tn), lambda i, j: (0, j))],
        out_specs=pl.BlockSpec((tm, tn), lambda i, j: (i, j)),
        compiler_params=_cparams(("parallel", "parallel")),
    )(t2, s3, b3, w3, xs, s1, b1, wsc)


def fused_final_ident(t2, s3, b3, w3, xid, s1, b1):
    m, k3 = t2.shape
    e = w3.shape[1]
    tm = _pick_row_tile(m)
    tn = _pick_col_tile(e)
    return pl.pallas_call(
        _final_ident_kernel,
        out_shape=jax.ShapeDtypeStruct((m, e), jnp.float32),
        grid=(m // tm, e // tn),
        in_specs=[pl.BlockSpec((tm, k3), lambda i, j: (i, 0)),
                  pl.BlockSpec((1, k3), lambda i, j: (0, 0)),
                  pl.BlockSpec((1, k3), lambda i, j: (0, 0)),
                  pl.BlockSpec((k3, tn), lambda i, j: (0, j)),
                  pl.BlockSpec((tm, tn), lambda i, j: (i, j)),
                  pl.BlockSpec((1, tn), lambda i, j: (0, j)),
                  pl.BlockSpec((1, tn), lambda i, j: (0, j))],
        out_specs=pl.BlockSpec((tm, tn), lambda i, j: (i, j)),
        compiler_params=_cparams(("parallel", "parallel")),
    )(t2, s3, b3, w3, xid, s1, b1)


# --------------------------------- glue -------------------------------------

def _round_up(n, m):
    return ((n + m - 1) // m) * m


def _pad2d(w, rows, cols):
    r, c = w.shape
    return jnp.pad(w.astype(jnp.float32), ((0, rows - r), (0, cols - c)))


def _affine(mean, var, gamma, beta, cpad):
    scale = (gamma / jnp.sqrt(var + EPS)).astype(jnp.float32)
    bias = (beta - mean * scale).astype(jnp.float32)
    pad = cpad - scale.shape[0]
    return (jnp.pad(scale, (0, pad)).reshape(1, cpad),
            jnp.pad(bias, (0, pad)).reshape(1, cpad))


def _moments(sums, ssqs, rows, c):
    s = jnp.sum(sums, axis=(0, 1))[:c]
    q = jnp.sum(ssqs, axis=(0, 1))[:c]
    mean = s / rows
    var = jnp.maximum(q / rows - mean * mean, 0.0)
    return mean, var


def _im2col_3x3(a_nhwc, stride, ho, wo):
    # TODO(synk): the 9-tap halo/stride gather stays in XLA; the strided, tap-shifted
    # windows are not expressible as rectangular BlockSpec blocks, so only the 9
    # tap-split matmuls + BN-stat emission run inside the Pallas kernel.
    n, _, _, c = a_nhwc.shape
    ap = jnp.pad(a_nhwc, ((0, 0), (1, 1), (1, 1), (0, 0)))  # post-activation -> pad stays 0
    cols = []
    for kh in range(3):
        for kw in range(3):
            cols.append(ap[:, kh:kh + (ho - 1) * stride + 1:stride,
                           kw:kw + (wo - 1) * stride + 1:stride, :])
    patches = jnp.concatenate(cols, axis=-1)                 # (kh, kw, c) channel order
    return patches.reshape(n * ho * wo, 9 * c)


def _preact_bottleneck_impl(x_nchw, params, stride, cdt):
    n, cin, h, w = x_nchw.shape
    planes = params["w1"].shape[0]
    e = EXPANSION * planes

    cin_p = _round_up(cin, LANE)
    p_p = _round_up(planes, LANE)
    e_p = _round_up(e, LANE)

    ho = (h - 1) // stride + 1
    wo = (w - 1) // stride + 1
    m = n * h * w
    mo = n * ho * wo

    # NHWC, channel-padded to a lane multiple.
    # TODO(synk): in a stacked model keep activations NHWC channel-padded end-to-end to
    # drop these boundary transposes/pads.
    x_nhwc = jnp.transpose(x_nchw, (0, 2, 3, 1)).astype(jnp.float32)
    x_nhwc_p = jnp.pad(x_nhwc, ((0, 0), (0, 0), (0, 0), (0, cin_p - cin)))
    x2d_p = x_nhwc_p.reshape(m, cin_p)

    # bn1 training-mode batch stats: single fused E[x] / E[x^2] pass over x.
    sx = jnp.sum(x2d_p[:, :cin], axis=0)
    sxx = jnp.sum(x2d_p[:, :cin] * x2d_p[:, :cin], axis=0)
    mean1 = sx / m
    var1 = jnp.maximum(sxx / m - mean1 * mean1, 0.0)
    s1, b1 = _affine(mean1, var1, params["bn1_gamma"], params["bn1_beta"], cin_p)

    # Weights: zero-padded, [K, N] layout, cast once to the MXU dtype.
    w1 = _pad2d(params["w1"][:, :, 0, 0].T, cin_p, p_p).astype(cdt)
    w3 = _pad2d(params["w3"][:, :, 0, 0].T, p_p, e_p).astype(cdt)
    w2_khw = jnp.transpose(params["w2"], (2, 3, 1, 0))                     # (kh, kw, ci, co)
    w2_p = jnp.zeros((3, 3, p_p, p_p), jnp.float32).at[:, :, :planes, :planes].set(w2_khw)
    w2_flat = w2_p.reshape(9 * p_p, p_p).astype(cdt)

    # --- K1: conv1 (1x1) fused with bn1+relu; emits bn2 partial stats --------------
    t1, sum2, ssq2 = fused_bn_relu_matmul(x2d_p, s1, b1, w1, out_dtype=cdt)
    mean2, var2 = _moments(sum2, ssq2, m, planes)
    s2, b2 = _affine(mean2, var2, params["bn2_gamma"], params["bn2_beta"], p_p)

    # bn2+relu BEFORE the spatial zero-pad (padded taps must stay exactly 0, matching
    # PyTorch's conv2 padding of the post-activation). XLA fuses this into the gather.
    a2 = jnp.maximum(t1.astype(jnp.float32) * s2 + b2, 0.0).astype(cdt)
    patches = _im2col_3x3(a2.reshape(n, h, w, p_p), stride, ho, wo)        # [mo, 9*p_p]

    # --- K2: conv2 (3x3) as 9 tap-accumulating matmuls; emits bn3 stats ------------
    t2, sum3, ssq3 = fused_matmul_ksplit(patches, w2_flat, p_p, out_dtype=cdt)
    mean3, var3 = _moments(sum3, ssq3, mo, planes)
    s3, b3 = _affine(mean3, var3, params["bn3_gamma"], params["bn3_beta"], p_p)

    # --- K3: conv3 (1x1) + bn3+relu + residual --------------------------------------
    if stride != 1 or cin != e:
        xs = x_nhwc_p[:, ::stride, ::stride, :].reshape(mo, cin_p)
        wsc = _pad2d(params["wsc"][:, :, 0, 0].T, cin_p, e_p).astype(cdt)
        out2d = fused_final_proj(t2, s3, b3, w3, xs, s1, b1, wsc)
    else:
        # Identity shortcut (= relu(bn1(x)) in this module): elementwise add, no matmul.
        out2d = fused_final_ident(t2, s3, b3, w3, x2d_p, s1, b1)

    out = out2d[:, :e].reshape(n, ho, wo, e)
    return jnp.transpose(out, (0, 3, 1, 2))                                # back to NCHW


@functools.partial(jax.jit, static_argnums=(2, 3))
def _preact_bottleneck_jit(x, params, stride, compute_dtype):
    return _preact_bottleneck_impl(x, params, stride, compute_dtype)


def preact_bottleneck_pallas(x, params, stride, compute_dtype=jnp.bfloat16):
    """compute_dtype=bf16 -> full MXU rate + halved intermediate HBM traffic (f32 acc/stats)."""
    return _preact_bottleneck_jit(x, params, stride, compute_dtype)


# --------------------------- pure-JAX reference ------------------------------

def preact_bottleneck_reference(x, params, stride):
    def bn(t, g, b):
        mu = t.mean(axis=(0, 2, 3), keepdims=True)
        v = ((t - mu) ** 2).mean(axis=(0, 2, 3), keepdims=True)
        return (t - mu) / jnp.sqrt(v + EPS) * g.reshape(1, -1, 1, 1) + b.reshape(1, -1, 1, 1)

    def conv(t, w, s=1, p=0):
        return lax.conv_general_dilated(
            t, w, (s, s), [(p, p), (p, p)],
            dimension_numbers=("NCHW", "OIHW", "NCHW"))

    cin = x.shape[1]
    planes = params["w1"].shape[0]
    out = jax.nn.relu(bn(x, params["bn1_gamma"], params["bn1_beta"]))
    if stride != 1 or cin != EXPANSION * planes:
        shortcut = conv(out, params["wsc"], s=stride)
    else:
        shortcut = out
    out = conv(out, params["w1"])
    out = conv(jax.nn.relu(bn(out, params["bn2_gamma"], params["bn2_beta"])),
               params["w2"], s=stride, p=1)
    out = conv(jax.nn.relu(bn(out, params["bn3_gamma"], params["bn3_beta"])),
               params["w3"])
    return out + shortcut


# --------------------------------- main --------------------------------------

def _make_params(key, in_planes, planes):
    ks = jax.random.split(key, 10)
    e = EXPANSION * planes
    return {
        "bn1_gamma": 1.0 + 0.1 * jax.random.normal(ks[0], (in_planes,), jnp.float32),
        "bn1_beta": 0.1 * jax.random.normal(ks[1], (in_planes,), jnp.float32),
        "w1": 0.2 * jax.random.normal(ks[2], (planes, in_planes, 1, 1), jnp.float32),
        "bn2_gamma": 1.0 + 0.1 * jax.random.normal(ks[3], (planes,), jnp.float32),
        "bn2_beta": 0.1 * jax.random.normal(ks[4], (planes,), jnp.float32),
        "w2": 0.2 * jax.random.normal(ks[5], (planes, planes, 3, 3), jnp.float32),
        "bn3_gamma": 1.0 + 0.1 * jax.random.normal(ks[6], (planes,), jnp.float32),
        "bn3_beta": 0.1 * jax.random.normal(ks[7], (planes,), jnp.float32),
        "w3": 0.2 * jax.random.normal(ks[8], (e, planes, 1, 1), jnp.float32),
        "wsc": 0.2 * jax.random.normal(ks[9], (e, in_planes, 1, 1), jnp.float32),
    }


if __name__ == "__main__":
    root = jax.random.PRNGKey(0)

    cases = [
        # (N, in_planes, planes, H=W, stride)
        (2, 8, 4, 16, 2),   # projection shortcut (stride 2, cin != 4*planes)
        (2, 16, 4, 8, 1),   # identity shortcut   (stride 1, cin == 4*planes)
    ]

    for idx, (n, cin, planes, hw, stride) in enumerate(cases):
        kp, kx = jax.random.split(jax.random.fold_in(root, idx))
        params = _make_params(kp, cin, planes)
        x = jax.random.normal(kx, (n, cin, hw, hw), jnp.float32)

        ref = jax.block_until_ready(preact_bottleneck_reference(x, params, stride))
        exp_shape = (n, EXPANSION * planes, hw // stride, hw // stride)
        assert ref.shape == exp_shape

        # Strict correctness gate: f32 compute path.
        out_f32 = jax.block_until_ready(
            preact_bottleneck_pallas(x, params, stride, jnp.float32))
        assert out_f32.shape == exp_shape
        err_f32 = float(jnp.max(jnp.abs(out_f32 - ref)))
        assert jnp.allclose(out_f32, ref, atol=2e-4, rtol=2e-4), ("f32", idx, err_f32)

        # Default bf16 MXU path (perf config): sanity check at bf16-level tolerance.
        out_bf = jax.block_until_ready(preact_bottleneck_pallas(x, params, stride))
        assert out_bf.shape == exp_shape
        err_bf = float(jnp.max(jnp.abs(out_bf.astype(jnp.float32) - ref)))
        assert jnp.allclose(out_bf.astype(jnp.float32), ref, atol=1e-1, rtol=1e-1), (
            "bf16", idx, err_bf)

    print("KERNEL_OK")
</pallas_src>

<mosaic_0001>
module attributes {stable_mosaic.version = 11 : i64} {
  func.func @_bn_relu_mm_stats_kernel(%arg0: i32, %arg1: memref<512x128xf32, #tpu.memory_space<vmem>>, %arg2: memref<1x128xf32, #tpu.memory_space<vmem>>, %arg3: memref<1x128xf32, #tpu.memory_space<vmem>>, %arg4: memref<128x128xf32, #tpu.memory_space<vmem>>, %arg5: memref<512x128xf32, #tpu.memory_space<vmem>>, %arg6: memref<1x1x128xf32, #tpu.memory_space<vmem>>, %arg7: memref<1x1x128xf32, #tpu.memory_space<vmem>>) attributes {dimension_semantics = [#tpu.dimension_semantics<parallel>], iteration_bounds = array<i64: 1>, scalar_prefetch = 0 : i64, scratch_operands = 0 : i64, tpu.core_type = #tpu.core_type<tc>, window_params = [{transform_indices = @transform_0, window_bounds = array<i64: 512, 128>}, {pipeline_mode = #tpu.pipeline_mode<synchronous>, transform_indices = @transform_1, window_bounds = array<i64: 1, 128>}, {pipeline_mode = #tpu.pipeline_mode<synchronous>, transform_indices = @transform_2, window_bounds = array<i64: 1, 128>}, {pipeline_mode = #tpu.pipeline_mode<synchronous>, transform_indices = @transform_3, window_bounds = array<i64: 128, 128>}, {transform_indices = @transform_4, window_bounds = array<i64: 512, 128>}, {transform_indices = @transform_5, window_bounds = array<i64: 1, 1, 128>}, {transform_indices = @transform_6, window_bounds = array<i64: 1, 1, 128>}]} {
    %c0 = arith.constant 0 : index
    %c0_0 = arith.constant 0 : index
    %0 = vector.load %arg1[%c0, %c0_0] : memref<512x128xf32, #tpu.memory_space<vmem>>, vector<512x128xf32>
    %c0_1 = arith.constant 0 : index
    %c0_2 = arith.constant 0 : index
    %1 = vector.load %arg2[%c0_1, %c0_2] : memref<1x128xf32, #tpu.memory_space<vmem>>, vector<1x128xf32>
    %2 = vector.broadcast %1 : vector<1x128xf32> to vector<512x128xf32>
    %3 = arith.mulf %0, %2 : vector<512x128xf32>
    %c0_3 = arith.constant 0 : index
    %c0_4 = arith.constant 0 : index
    %4 = vector.load %arg3[%c0_3, %c0_4] : memref<1x128xf32, #tpu.memory_space<vmem>>, vector<1x128xf32>
    %5 = vector.broadcast %4 : vector<1x128xf32> to vector<512x128xf32>
    %6 = arith.addf %3, %5 : vector<512x128xf32>
    %cst = arith.constant 0.000000e+00 : f32
    %7 = vector.broadcast %cst : f32 to vector<512x128xf32>
    %8 = arith.maximumf %6, %7 : vector<512x128xf32>
    %c0_5 = arith.constant 0 : index
    %c0_6 = arith.constant 0 : index
    %9 = vector.load %arg4[%c0_5, %c0_6] : memref<128x128xf32, #tpu.memory_space<vmem>>, vector<128x128xf32>
    %cst_7 = arith.constant dense<0.000000e+00> : vector<512x128xf32>
    %10 = tpu.matmul %8, %9, %cst_7 {dimension_numbers = #tpu.dot_dimension_numbers<[1], [0], [0], [1], [0, 0, 1, 1], [], []>} : vector<512x128xf32>, vector<128x128xf32>, vector<512x128xf32> -> vector<512x128xf32>
    %c0_8 = arith.constant 0 : index
    %c0_9 = arith.constant 0 : index
    %11 = vector.load %arg5[%c0_8, %c0_9] : memref<512x128xf32, #tpu.memory_space<vmem>>, vector<512x128xf32>
    tpu.vector_store %arg5[%c0_8, %c0_9], %10 {strides = array<i32>} : memref<512x128xf32, #tpu.memory_space<vmem>>, vector<512x128xf32>,
    %cst_10 = arith.constant dense<0.000000e+00> : vector<128xf32>
    %12 = vector.multi_reduction <add>, %10, %cst_10 [0] : vector<512x128xf32> to vector<128xf32>
    %13 = vector.shape_cast %12 : vector<128xf32> to vector<1x128xf32>
    %14 = vector.shape_cast %13 : vector<1x128xf32> to vector<1x1x128xf32>
    %c0_11 = arith.constant 0 : index
    %c0_12 = arith.constant 0 : index
    %c0_13 = arith.constant 0 : index
    %15 = vector.load %arg6[%c0_11, %c0_12, %c0_13] : memref<1x1x128xf32, #tpu.memory_space<vmem>>, vector<1x1x128xf32>
    tpu.vector_store %arg6[%c0_11, %c0_12, %c0_13], %14 {strides = array<i32>} : memref<1x1x128xf32, #tpu.memory_space<vmem>>, vector<1x1x128xf32>,
    %16 = arith.mulf %10, %10 : vector<512x128xf32>
    %cst_14 = arith.constant dense<0.000000e+00> : vector<128xf32>
    %17 = vector.multi_reduction <add>, %16, %cst_14 [0] : vector<512x128xf32> to vector<128xf32>
    %18 = vector.shape_cast %17 : vector<128xf32> to vector<1x128xf32>
    %19 = vector.shape_cast %18 : vector<1x128xf32> to vector<1x1x128xf32>
    %c0_15 = arith.constant 0 : index
    %c0_16 = arith.constant 0 : index
    %c0_17 = arith.constant 0 : index
    %20 = vector.load %arg7[%c0_15, %c0_16, %c0_17] : memref<1x1x128xf32, #tpu.memory_space<vmem>>, vector<1x1x128xf32>
    tpu.vector_store %arg7[%c0_15, %c0_16, %c0_17], %19 {strides = array<i32>} : memref<1x1x128xf32, #tpu.memory_space<vmem>>, vector<1x1x128xf32>,
    return
  }
  func.func @transform_0(%arg0: i32) -> (i32, i32) {
    %c0_i32 = arith.constant 0 : i32
    %c0_i32_0 = arith.constant 0 : i32
    return %arg0, %c0_i32 : i32, i32
  }
  func.func @transform_1(%arg0: i32) -> (i32, i32) {
    %c0_i32 = arith.constant 0 : i32
    %c0_i32_0 = arith.constant 0 : i32
    %c0_i32_1 = arith.constant 0 : i32
    return %c0_i32, %c0_i32_0 : i32, i32
  }
  func.func @transform_2(%arg0: i32) -> (i32, i32) {
    %c0_i32 = arith.constant 0 : i32
    %c0_i32_0 = arith.constant 0 : i32
    %c0_i32_1 = arith.constant 0 : i32
    return %c0_i32, %c0_i32_0 : i32, i32
  }
  func.func @transform_3(%arg0: i32) -> (i32, i32) {
    %c0_i32 = arith.constant 0 : i32
    %c0_i32_0 = arith.constant 0 : i32
    %c0_i32_1 = arith.constant 0 : i32
    return %c0_i32, %c0_i32_0 : i32, i32
  }
  func.func @transform_4(%arg0: i32) -> (i32, i32) {
    %c0_i32 = arith.constant 0 : i32
    %c0_i32_0 = arith.constant 0 : i32
    return %arg0, %c0_i32 : i32, i32
  }
  func.func @transform_5(%arg0: i32) -> (i32, i32, i32) {
    %c0_i32 = arith.constant 0 : i32
    %c0_i32_0 = arith.constant 0 : i32
    %c0_i32_1 = arith.constant 0 : i32
    return %arg0, %c0_i32, %c0_i32_0 : i32, i32, i32
  }
  func.func @transform_6(%arg0: i32) -> (i32, i32, i32) {
    %c0_i32 = arith.constant 0 : i32
    %c0_i32_0 = arith.constant 0 : i32
    %c0_i32_1 = arith.constant 0 : i32
    return %arg0, %c0_i32, %c0_i32_0 : i32, i32, i32
  }
}

module attributes {stable_mosaic.version = 11 : i64} {
  func.func @_mm_stats_acc_kernel(%arg0: i32, %arg1: i32, %arg2: memref<128x128xf32, #tpu.memory_space<vmem>>, %arg3: memref<128x128xf32, #tpu.memory_space<vmem>>, %arg4: memref<128x128xf32, #tpu.memory_space<vmem>>, %arg5: memref<1x1x128xf32, #tpu.memory_space<vmem>>, %arg6: memref<1x1x128xf32, #tpu.memory_space<vmem>>, %arg7: memref<128x128xf32, #tpu.memory_space<vmem>>) attributes {dimension_semantics = [#tpu.dimension_semantics<parallel>, #tpu.dimension_semantics<arbitrary>], iteration_bounds = array<i64: 1, 9>, scalar_prefetch = 0 : i64, scratch_operands = 1 : i64, tpu.core_type = #tpu.core_type<tc>, window_params = [{transform_indices = @transform_0, window_bounds = array<i64: 128, 128>}, {transform_indices = @transform_1, window_bounds = array<i64: 128, 128>}, {transform_indices = @transform_2, window_bounds = array<i64: 128, 128>}, {transform_indices = @transform_3, window_bounds = array<i64: 1, 1, 128>}, {transform_indices = @transform_4, window_bounds = array<i64: 1, 1, 128>}]} {
    %c0_i32 = arith.constant 0 : i32
    %0 = arith.cmpi eq, %arg1, %c0_i32 : i32
    %1 = arith.extui %0 : i1 to i32
    %c0_i32_0 = arith.constant 0 : i32
    %2 = arith.cmpi ne, %1, %c0_i32_0 : i32
    scf.if %2 {
      %cst_9 = arith.constant 0.000000e+00 : f32
      %12 = vector.broadcast %cst_9 : f32 to vector<128x128xf32>
      %c0_10 = arith.constant 0 : index
      %c0_11 = arith.constant 0 : index
      %13 = vector.load %arg7[%c0_10, %c0_11] : memref<128x128xf32, #tpu.memory_space<vmem>>, vector<128x128xf32>
      tpu.vector_store %arg7[%c0_10, %c0_11], %12 {strides = array<i32>} : memref<128x128xf32, #tpu.memory_space<vmem>>, vector<128x128xf32>,
    } else {
    }
    %c0 = arith.constant 0 : index
    %c0_1 = arith.constant 0 : index
    %3 = vector.load %arg7[%c0, %c0_1] : memref<128x128xf32, #tpu.memory_space<vmem>>, vector<128x128xf32>
    %c0_2 = arith.constant 0 : index
    %c0_3 = arith.constant 0 : index
    %4 = vector.load %arg2[%c0_2, %c0_3] : memref<128x128xf32, #tpu.memory_space<vmem>>, vector<128x128xf32>
    %c0_4 = arith.constant 0 : index
    %c0_5 = arith.constant 0 : index
    %5 = vector.load %arg3[%c0_4, %c0_5] : memref<128x128xf32, #tpu.memory_space<vmem>>, vector<128x128xf32>
    %cst = arith.constant dense<0.000000e+00> : vector<128x128xf32>
    %6 = tpu.matmul %4, %5, %cst {dimension_numbers = #tpu.dot_dimension_numbers<[1], [0], [0], [1], [0, 0, 1, 1], [], []>} : vector<128x128xf32>, vector<128x128xf32>, vector<128x128xf32> -> vector<128x128xf32>
    %7 = arith.addf %3, %6 : vector<128x128xf32>
    %c0_6 = arith.constant 0 : index
    %c0_7 = arith.constant 0 : index
    %8 = vector.load %arg7[%c0_6, %c0_7] : memref<128x128xf32, #tpu.memory_space<vmem>>, vector<128x128xf32>
    tpu.vector_store %arg7[%c0_6, %c0_7], %7 {strides = array<i32>} : memref<128x128xf32, #tpu.memory_space<vmem>>, vector<128x128xf32>,
    %c8_i32 = arith.constant 8 : i32
    %9 = arith.cmpi eq, %arg1, %c8_i32 : i32
    %10 = arith.extui %9 : i1 to i32
    %c0_i32_8 = arith.constant 0 : i32
    %11 = arith.cmpi ne, %10, %c0_i32_8 : i32
    scf.if %11 {
      %c0_9 = arith.constant 0 : index
      %c0_10 = arith.constant 0 : index
      %12 = vector.load %arg7[%c0_9, %c0_10] : memref<128x128xf32, #tpu.memory_space<vmem>>, vector<128x128xf32>
      %c0_11 = arith.constant 0 : index
      %c0_12 = arith.constant 0 : index
      %13 = vector.load %arg4[%c0_11, %c0_12] : memref<128x128xf32, #tpu.memory_space<vmem>>, vector<128x128xf32>
      tpu.vector_store %arg4[%c0_11, %c0_12], %12 {strides = array<i32>} : memref<128x128xf32, #tpu.memory_space<vmem>>, vector<128x128xf32>,
      %cst_13 = arith.constant dense<0.000000e+00> : vector<128xf32>
      %14 = vector.multi_reduction <add>, %12, %cst_13 [0] : vector<128x128xf32> to vector<128xf32>
      %15 = vector.shape_cast %14 : vector<128xf32> to vector<1x128xf32>
      %16 = vector.shape_cast %15 : vector<1x128xf32> to vector<1x1x128xf32>
      %c0_14 = arith.constant 0 : index
      %c0_15 = arith.constant 0 : index
      %c0_16 = arith.constant 0 : index
      %17 = vector.load %arg5[%c0_14, %c0_15, %c0_16] : memref<1x1x128xf32, #tpu.memory_space<vmem>>, vector<1x1x128xf32>
      tpu.vector_store %arg5[%c0_14, %c0_15, %c0_16], %16 {strides = array<i32>} : memref<1x1x128xf32, #tpu.memory_space<vmem>>, vector<1x1x128xf32>,
      %18 = arith.mulf %12, %12 : vector<128x128xf32>
      %cst_17 = arith.constant dense<0.000000e+00> : vector<128xf32>
      %19 = vector.multi_reduction <add>, %18, %cst_17 [0] : vector<128x128xf32> to vector<128xf32>
      %20 = vector.shape_cast %19 : vector<128xf32> to vector<1x128xf32>
      %21 = vector.shape_cast %20 : vector<1x128xf32> to vector<1x1x128xf32>
      %c0_18 = arith.constant 0 : index
      %c0_19 = arith.constant 0 : index
      %c0_20 = arith.constant 0 : index
      %22 = vector.load %arg6[%c0_18, %c0_19, %c0_20] : memref<1x1x128xf32, #tpu.memory_space<vmem>>, vector<1x1x128xf32>
      tpu.vector_store %arg6[%c0_18, %c0_19, %c0_20], %21 {strides = array<i32>} : memref<1x1x128xf32, #tpu.memory_space<vmem>>, vector<1x1x128xf32>,
    } else {
    }
    return
  }
  func.func @transform_0(%arg0: i32, %arg1: i32) -> (i32, i32) {
    %c0_i32 = arith.constant 0 : i32
    return %arg0, %arg1 : i32, i32
  }
  func.func @transform_1(%arg0: i32, %arg1: i32) -> (i32, i32) {
    %c0_i32 = arith.constant 0 : i32
    %c0_i32_0 = arith.constant 0 : i32
    return %arg1, %c0_i32 : i32, i32
  }
  func.func @transform_2(%arg0: i32, %arg1: i32) -> (i32, i32) {
    %c0_i32 = arith.constant 0 : i32
    %c0_i32_0 = arith.constant 0 : i32
    return %arg0, %c0_i32 : i32, i32
  }
  func.func @transform_3(%arg0: i32, %arg1: i32) -> (i32, i32, i32) {
    %c0_i32 = arith.constant 0 : i32
    %c0_i32_0 = arith.constant 0 : i32
    %c0_i32_1 = arith.constant 0 : i32
    return %arg0, %c0_i32, %c0_i32_0 : i32, i32, i32
  }
  func.func @transform_4(%arg0: i32, %arg1: i32) -> (i32, i32, i32) {
    %c0_i32 = arith.constant 0 : i32
    %c0_i32_0 = arith.constant 0 : i32
    %c0_i32_1 = arith.constant 0 : i32
    return %arg0, %c0_i32, %c0_i32_0 : i32, i32, i32
  }
}

module attributes {stable_mosaic.version = 11 : i64} {
  func.func @_final_proj_kernel(%arg0: i32, %arg1: i32, %arg2: memref<128x128xf32, #tpu.memory_space<vmem>>, %arg3: memref<1x128xf32, #tpu.memory_space<vmem>>, %arg4: memref<1x128xf32, #tpu.memory_space<vmem>>, %arg5: memref<128x128xf32, #tpu.memory_space<vmem>>, %arg6: memref<128x128xf32, #tpu.memory_space<vmem>>, %arg7: memref<1x128xf32, #tpu.memory_space<vmem>>, %arg8: memref<1x128xf32, #tpu.memory_space<vmem>>, %arg9: memref<128x128xf32, #tpu.memory_space<vmem>>, %arg10: memref<128x128xf32, #tpu.memory_space<vmem>>) attributes {dimension_semantics = [#tpu.dimension_semantics<parallel>, #tpu.dimension_semantics<parallel>], iteration_bounds = array<i64: 1, 1>, scalar_prefetch = 0 : i64, scratch_operands = 0 : i64, tpu.core_type = #tpu.core_type<tc>, window_params = [{transform_indices = @transform_0, window_bounds = array<i64: 128, 128>}, {pipeline_mode = #tpu.pipeline_mode<synchronous>, transform_indices = @transform_1, window_bounds = array<i64: 1, 128>}, {pipeline_mode = #tpu.pipeline_mode<synchronous>, transform_indices = @transform_2, window_bounds = array<i64: 1, 128>}, {transform_indices = @transform_3, window_bounds = array<i64: 128, 128>}, {transform_indices = @transform_4, window_bounds = array<i64: 128, 128>}, {pipeline_mode = #tpu.pipeline_mode<synchronous>, transform_indices = @transform_5, window_bounds = array<i64: 1, 128>}, {pipeline_mode = #tpu.pipeline_mode<synchronous>, transform_indices = @transform_6, window_bounds = array<i64: 1, 128>}, {transform_indices = @transform_7, window_bounds = array<i64: 128, 128>}, {transform_indices = @transform_8, window_bounds = array<i64: 128, 128>}]} {
    %c0 = arith.constant 0 : index
    %c0_0 = arith.constant 0 : index
    %0 = vector.load %arg2[%c0, %c0_0] : memref<128x128xf32, #tpu.memory_space<vmem>>, vector<128x128xf32>
    %c0_1 = arith.constant 0 : index
    %c0_2 = arith.constant 0 : index
    %1 = vector.load %arg3[%c0_1, %c0_2] : memref<1x128xf32, #tpu.memory_space<vmem>>, vector<1x128xf32>
    %2 = vector.broadcast %1 : vector<1x128xf32> to vector<128x128xf32>
    %3 = arith.mulf %0, %2 : vector<128x128xf32>
    %c0_3 = arith.constant 0 : index
    %c0_4 = arith.constant 0 : index
    %4 = vector.load %arg4[%c0_3, %c0_4] : memref<1x128xf32, #tpu.memory_space<vmem>>, vector<1x128xf32>
    %5 = vector.broadcast %4 : vector<1x128xf32> to vector<128x128xf32>
    %6 = arith.addf %3, %5 : vector<128x128xf32>
    %cst = arith.constant 0.000000e+00 : f32
    %7 = vector.broadcast %cst : f32 to vector<128x128xf32>
    %8 = arith.maximumf %6, %7 : vector<128x128xf32>
    %c0_5 = arith.constant 0 : index
    %c0_6 = arith.constant 0 : index
    %9 = vector.load %arg5[%c0_5, %c0_6] : memref<128x128xf32, #tpu.memory_space<vmem>>, vector<128x128xf32>
    %cst_7 = arith.constant dense<0.000000e+00> : vector<128x128xf32>
    %10 = tpu.matmul %8, %9, %cst_7 {dimension_numbers = #tpu.dot_dimension_numbers<[1], [0], [0], [1], [0, 0, 1, 1], [], []>} : vector<128x128xf32>, vector<128x128xf32>, vector<128x128xf32> -> vector<128x128xf32>
    %c0_8 = arith.constant 0 : index
    %c0_9 = arith.constant 0 : index
    %11 = vector.load %arg6[%c0_8, %c0_9] : memref<128x128xf32, #tpu.memory_space<vmem>>, vector<128x128xf32>
    %c0_10 = arith.constant 0 : index
    %c0_11 = arith.constant 0 : index
    %12 = vector.load %arg7[%c0_10, %c0_11] : memref<1x128xf32, #tpu.memory_space<vmem>>, vector<1x128xf32>
    %13 = vector.broadcast %12 : vector<1x128xf32> to vector<128x128xf32>
    %14 = arith.mulf %11, %13 : vector<128x128xf32>
    %c0_12 = arith.constant 0 : index
    %c0_13 = arith.constant 0 : index
    %15 = vector.load %arg8[%c0_12, %c0_13] : memref<1x128xf32, #tpu.memory_space<vmem>>, vector<1x128xf32>
    %16 = vector.broadcast %15 : vector<1x128xf32> to vector<128x128xf32>
    %17 = arith.addf %14, %16 : vector<128x128xf32>
    %cst_14 = arith.constant 0.000000e+00 : f32
    %18 = vector.broadcast %cst_14 : f32 to vector<128x128xf32>
    %19 = arith.maximumf %17, %18 : vector<128x128xf32>
    %c0_15 = arith.constant 0 : index
    %c0_16 = arith.constant 0 : index
    %20 = vector.load %arg9[%c0_15, %c0_16] : memref<128x128xf32, #tpu.memory_space<vmem>>, vector<128x128xf32>
    %cst_17 = arith.constant dense<0.000000e+00> : vector<128x128xf32>
    %21 = tpu.matmul %19, %20, %cst_17 {dimension_numbers = #tpu.dot_dimension_numbers<[1], [0], [0], [1], [0, 0, 1, 1], [], []>} : vector<128x128xf32>, vector<128x128xf32>, vector<128x128xf32> -> vector<128x128xf32>
    %22 = arith.addf %10, %21 : vector<128x128xf32>
    %c0_18 = arith.constant 0 : index
    %c0_19 = arith.constant 0 : index
    %23 = vector.load %arg10[%c0_18, %c0_19] : memref<128x128xf32, #tpu.memory_space<vmem>>, vector<128x128xf32>
    tpu.vector_store %arg10[%c0_18, %c0_19], %22 {strides = array<i32>} : memref<128x128xf32, #tpu.memory_space<vmem>>, vector<128x128xf32>,
    return
  }
  func.func @transform_0(%arg0: i32, %arg1: i32) -> (i32, i32) {
    %c0_i32 = arith.constant 0 : i32
    %c0_i32_0 = arith.constant 0 : i32
    return %arg0, %c0_i32 : i32, i32
  }
  func.func @transform_1(%arg0: i32, %arg1: i32) -> (i32, i32) {
    %c0_i32 = arith.constant 0 : i32
    %c0_i32_0 = arith.constant 0 : i32
    %c0_i32_1 = arith.constant 0 : i32
    return %c0_i32, %c0_i32_0 : i32, i32
  }
  func.func @transform_2(%arg0: i32, %arg1: i32) -> (i32, i32) {
    %c0_i32 = arith.constant 0 : i32
    %c0_i32_0 = arith.constant 0 : i32
    %c0_i32_1 = arith.constant 0 : i32
    return %c0_i32, %c0_i32_0 : i32, i32
  }
  func.func @transform_3(%arg0: i32, %arg1: i32) -> (i32, i32) {
    %c0_i32 = arith.constant 0 : i32
    %c0_i32_0 = arith.constant 0 : i32
    return %c0_i32, %arg1 : i32, i32
  }
  func.func @transform_4(%arg0: i32, %arg1: i32) -> (i32, i32) {
    %c0_i32 = arith.constant 0 : i32
    %c0_i32_0 = arith.constant 0 : i32
    return %arg0, %c0_i32 : i32, i32
  }
  func.func @transform_5(%arg0: i32, %arg1: i32) -> (i32, i32) {
    %c0_i32 = arith.constant 0 : i32
    %c0_i32_0 = arith.constant 0 : i32
    %c0_i32_1 = arith.constant 0 : i32
    return %c0_i32, %c0_i32_0 : i32, i32
  }
  func.func @transform_6(%arg0: i32, %arg1: i32) -> (i32, i32) {
    %c0_i32 = arith.constant 0 : i32
    %c0_i32_0 = arith.constant 0 : i32
    %c0_i32_1 = arith.constant 0 : i32
    return %c0_i32, %c0_i32_0 : i32, i32
  }
  func.func @transform_7(%arg0: i32, %arg1: i32) -> (i32, i32) {
    %c0_i32 = arith.constant 0 : i32
    %c0_i32_0 = arith.constant 0 : i32
    return %c0_i32, %arg1 : i32, i32
  }
  func.func @transform_8(%arg0: i32, %arg1: i32) -> (i32, i32) {
    %c0_i32 = arith.constant 0 : i32
    return %arg0, %arg1 : i32, i32
  }
}

</mosaic_0001>

<llo_original>
// kernel: _preact_bottleneck_jit.3
$region0: #{_preact_bottleneck_jit.3}
  #allocation0 [shape = 'u32[]', space=smem, size = 0x4, offset = 0x4, fixed_abs, tag = 'smem constant byte address 0x4 - core index']
  #allocation1 [shape = 'u32[144,128]{1,0:T(1,128)}', space=vmem, size = 0x12000, scoped, tag = 'internal scratch']
  %s0 = inlined_call_operand.vmem [shape: f32[512,128], index: 0, kind: input, shape index: {}]
  %s1 = inlined_call_operand.vmem [shape: f32[1,128], index: 1, kind: input, shape index: {}]
  %s2 = inlined_call_operand.vmem [shape: f32[1,128], index: 2, kind: input, shape index: {}]
  %s3 = inlined_call_operand.vmem [shape: f32[128,128], index: 3, kind: input, shape index: {}]
  %s4 = inlined_call_operand.vmem [shape: f32[512,128], index: 4, kind: output, shape index: {0}]
  %s5 = inlined_call_operand.vmem [shape: f32[1,1,128], index: 5, kind: output, shape index: {1}]
  %s6 = inlined_call_operand.vmem [shape: f32[1,1,128], index: 6, kind: output, shape index: {2}]
  %7 = xla_tuple %s4, %s5, %s6
  %s8 = sld [smem:[#allocation0]]
  $region42: #{_preact_bottleneck_jit.3} parent=0
    _
  %s10 = ssub.s32 1, %s8
  %s11 = scalar_select 0, %s10, %s8
  // Predicated region
  $region2: #{_preact_bottleneck_jit.3} parent=0 // pred_check
    _
  $region3: #{_preact_bottleneck_jit.3} parent=0 // pred_check_branch
    %13 = sbr.rel (0) target = $region5
  $region4: #{_preact_bottleneck_jit.3} parent=0 // pred_region
    _
  $region5: #{_preact_bottleneck_jit.3} parent=0 // pred_fallthru
    _
  // Predicated region
  $region6: #{_preact_bottleneck_jit.3} parent=0 // pred_check
    _
  $region7: #{_preact_bottleneck_jit.3} parent=0 // pred_check_branch
    %15 = sbr.rel (0) target = $region9
  $region8: #{_preact_bottleneck_jit.3} parent=0 // pred_region
    _
  $region9: #{_preact_bottleneck_jit.3} parent=0 // pred_fallthru
    _
  // Predicated region
  $region10: #{_preact_bottleneck_jit.3} parent=0 // pred_check
    _
  $region11: #{_preact_bottleneck_jit.3} parent=0 // pred_check_branch
    %17 = sbr.rel (0) target = $region13
  $region12: #{_preact_bottleneck_jit.3} parent=0 // pred_region
    _
  $region13: #{_preact_bottleneck_jit.3} parent=0 // pred_fallthru
    _
  // Predicated region
  $region14: #{_preact_bottleneck_jit.3} parent=0 // pred_check
    _
  $region15: #{_preact_bottleneck_jit.3} parent=0 // pred_check_branch
    %19 = sbr.rel (0) target = $region17
  $region16: #{_preact_bottleneck_jit.3} parent=0 // pred_region
    _
  $region17: #{_preact_bottleneck_jit.3} parent=0 // pred_fallthru
    _
  %v20 = vld [vmem:[%s0] sm:$0xff]
  %v21 = vld [vmem:[%s0 + $0x8] sm:$0xff]
  %v22 = vld [vmem:[%s0 + $0x10] sm:$0xff]
  %v23 = vld [vmem:[%s0 + $0x18] sm:$0xff]
  %v24 = vld [vmem:[%s0 + $0x20] sm:$0xff]
  %v25 = vld [vmem:[%s0 + $0x28] sm:$0xff]
  %v26 = vld [vmem:[%s0 + $0x30] sm:$0xff]
  %v27 = vld [vmem:[%s0 + $0x38] sm:$0xff]
  %v28 = vld [vmem:[%s0 + $0x40] sm:$0xff]
  %v29 = vld [vmem:[%s0 + $0x48] sm:$0xff]
  %v30 = vld [vmem:[%s0 + $0x50] sm:$0xff]
  %v31 = vld [vmem:[%s0 + $0x58] sm:$0xff]
  %v32 = vld [vmem:[%s0 + $0x60] sm:$0xff]
  %v33 = vld [vmem:[%s0 + $0x68] sm:$0xff]
  %v34 = vld [vmem:[%s0 + $0x70] sm:$0xff]
  %v35 = vld [vmem:[%s0 + $0x78] sm:$0xff]
  %v36 = vld [vmem:[%s0 + $0x80] sm:$0xff]
  %v37 = vld [vmem:[%s0 + $0x88] sm:$0xff]
  %v38 = vld [vmem:[%s0 + $0x90] sm:$0xff]
  %v39 = vld [vmem:[%s0 + $0x98] sm:$0xff]
  %v40 = vld [vmem:[%s0 + $0xa0] sm:$0xff]
  %v41 = vld [vmem:[%s0 + $0xa8] sm:$0xff]
  %v42 = vld [vmem:[%s0 + $0xb0] sm:$0xff]
  %v43 = vld [vmem:[%s0 + $0xb8] sm:$0xff]
  %v44 = vld [vmem:[%s0 + $0xc0] sm:$0xff]
  %v45 = vld [vmem:[%s0 + $0xc8] sm:$0xff]
  %v46 = vld [vmem:[%s0 + $0xd0] sm:$0xff]
  %v47 = vld [vmem:[%s0 + $0xd8] sm:$0xff]
  %v48 = vld [vmem:[%s0 + $0xe0] sm:$0xff]
  %v49 = vld [vmem:[%s0 + $0xe8] sm:$0xff]
  %v50 = vld [vmem:[%s0 + $0xf0] sm:$0xff]
  %v51 = vld [vmem:[%s0 + $0xf8] sm:$0xff]
  %v52 = vld [vmem:[%s0 + $0x100] sm:$0xff]
  %v53 = vld [vmem:[%s0 + $0x108] sm:$0xff]
  %v54 = vld [vmem:[%s0 + $0x110] sm:$0xff]
  %v55 = vld [vmem:[%s0 + $0x118] sm:$0xff]
  %v56 = vld [vmem:[%s0 + $0x120] sm:$0xff]
  %v57 = vld [vmem:[%s0 + $0x128] sm:$0xff]
  %v58 = vld [vmem:[%s0 + $0x130] sm:$0xff]
  %v59 = vld [vmem:[%s0 + $0x138] sm:$0xff]
  %v60 = vld [vmem:[%s0 + $0x140] sm:$0xff]
  %v61 = vld [vmem:[%s0 + $0x148] sm:$0xff]
  %v62 = vld [vmem:[%s0 + $0x150] sm:$0xff]
  %v63 = vld [vmem:[%s0 + $0x158] sm:$0xff]
  %v64 = vld [vmem:[%s0 + $0x160] sm:$0xff]
  %v65 = vld [vmem:[%s0 + $0x168] sm:$0xff]
  %v66 = vld [vmem:[%s0 + $0x170] sm:$0xff]
  %v67 = vld [vmem:[%s0 + $0x178] sm:$0xff]
  %v68 = vld [vmem:[%s0 + $0x180] sm:$0xff]
  %v69 = vld [vmem:[%s0 + $0x188] sm:$0xff]
  %v70 = vld [vmem:[%s0 + $0x190] sm:$0xff]
  %v71 = vld [vmem:[%s0 + $0x198] sm:$0xff]
  %v72 = vld [vmem:[%s0 + $0x1a0] sm:$0xff]
  %v73 = vld [vmem:[%s0 + $0x1a8] sm:$0xff]
  %v74 = vld [vmem:[%s0 + $0x1b0] sm:$0xff]
  %v75 = vld [vmem:[%s0 + $0x1b8] sm:$0xff]
  %v76 = vld [vmem:[%s0 + $0x1c0] sm:$0xff]
  %v77 = vld [vmem:[%s0 + $0x1c8] sm:$0xff]
  %v78 = vld [vmem:[%s0 + $0x1d0] sm:$0xff]
  %v79 = vld [vmem:[%s0 + $0x1d8] sm:$0xff]
  %v80 = vld [vmem:[%s0 + $0x1e0] sm:$0xff]
  %v81 = vld [vmem:[%s0 + $0x1e8] sm:$0xff]
  %v82 = vld [vmem:[%s0 + $0x1f0] sm:$0xff]
  %v83 = vld [vmem:[%s0 + $0x1f8] sm:$0xff]
  %v84 = vld [vmem:[%s1] sm:$0x1]
  %v86 = vlaneseq
  %v87 = vshrl.u32 %v86, 7
  %v88 = vsub.s32 0, %v87
  %v89 = vrot.slane %v84, %v88
  %v91 = vmul.f32 %v20, %v89
  %v92 = vmul.f32 %v21, %v89
  %v93 = vmul.f32 %v22, %v89
  %v94 = vmul.f32 %v23, %v89
  %v95 = vmul.f32 %v24, %v89
  %v96 = vmul.f32 %v25, %v89
  %v97 = vmul.f32 %v26, %v89
  %v98 = vmul.f32 %v27, %v89
  %v99 = vmul.f32 %v28, %v89
  %v100 = vmul.f32 %v29, %v89
  %v101 = vmul.f32 %v30, %v89
  %v102 = vmul.f32 %v31, %v89
  %v103 = vmul.f32 %v32, %v89
  %v104 = vmul.f32 %v33, %v89
  %v105 = vmul.f32 %v34, %v89
  %v106 = vmul.f32 %v35, %v89
  %v107 = vmul.f32 %v36, %v89
  %v108 = vmul.f32 %v37, %v89
  %v109 = vmul.f32 %v38, %v89
  %v110 = vmul.f32 %v39, %v89
  %v111 = vmul.f32 %v40, %v89
  %v112 = vmul.f32 %v41, %v89
  %v113 = vmul.f32 %v42, %v89
  %v114 = vmul.f32 %v43, %v89
  %v115 = vmul.f32 %v44, %v89
  %v116 = vmul.f32 %v45, %v89
  %v117 = vmul.f32 %v46, %v89
  %v118 = vmul.f32 %v47, %v89
  %v119 = vmul.f32 %v48, %v89
  %v120 = vmul.f32 %v49, %v89
  %v121 = vmul.f32 %v50, %v89
  %v122 = vmul.f32 %v51, %v89
  %v123 = vmul.f32 %v52, %v89
  %v124 = vmul.f32 %v53, %v89
  %v125 = vmul.f32 %v54, %v89
  %v126 = vmul.f32 %v55, %v89
  %v127 = vmul.f32 %v56, %v89
  %v128 = vmul.f32 %v57, %v89
  %v129 = vmul.f32 %v58, %v89
  %v130 = vmul.f32 %v59, %v89
  %v131 = vmul.f32 %v60, %v89
  %v132 = vmul.f32 %v61, %v89
  %v133 = vmul.f32 %v62, %v89
  %v134 = vmul.f32 %v63, %v89
  %v135 = vmul.f32 %v64, %v89
  %v136 = vmul.f32 %v65, %v89
  %v137 = vmul.f32 %v66, %v89
  %v138 = vmul.f32 %v67, %v89
  %v139 = vmul.f32 %v68, %v89
  %v140 = vmul.f32 %v69, %v89
  %v141 = vmul.f32 %v70, %v89
  %v142 = vmul.f32 %v71, %v89
  %v143 = vmul.f32 %v72, %v89
  %v144 = vmul.f32 %v73, %v89
  %v145 = vmul.f32 %v74, %v89
  %v146 = vmul.f32 %v75, %v89
  %v147 = vmul.f32 %v76, %v89
  %v148 = vmul.f32 %v77, %v89
  %v149 = vmul.f32 %v78, %v89
  %v150 = vmul.f32 %v79, %v89
  %v151 = vmul.f32 %v80, %v89
  %v152 = vmul.f32 %v81, %v89
  %v153 = vmul.f32 %v82, %v89
  %v154 = vmul.f32 %v83, %v89
  %v155 = vld [vmem:[%s2] sm:$0x1]
  %v157 = vlaneseq
  %v158 = vshrl.u32 %v157, 7
  %v159 = vsub.s32 0, %v158
  %v160 = vrot.slane %v155, %v159
  %v162 = vadd.f32 %v91, %v160
  %v163 = vadd.f32 %v92, %v160
  %v164 = vadd.f32 %v93, %v160
  %v165 = vadd.f32 %v94, %v160
  %v166 = vadd.f32 %v95, %v160
  %v167 = vadd.f32 %v96, %v160
  %v168 = vadd.f32 %v97, %v160
  %v169 = vadd.f32 %v98, %v160
  %v170 = vadd.f32 %v99, %v160
  %v171 = vadd.f32 %v100, %v160
  %v172 = vadd.f32 %v101, %v160
  %v173 = vadd.f32 %v102, %v160
  %v174 = vadd.f32 %v103, %v160
  %v175 = vadd.f32 %v104, %v160
  %v176 = vadd.f32 %v105, %v160
  %v177 = vadd.f32 %v106, %v160
  %v178 = vadd.f32 %v107, %v160
  %v179 = vadd.f32 %v108, %v160
  %v180 = vadd.f32 %v109, %v160
  %v181 = vadd.f32 %v110, %v160
  %v182 = vadd.f32 %v111, %v160
  %v183 = vadd.f32 %v112, %v160
  %v184 = vadd.f32 %v113, %v160
  %v185 = vadd.f32 %v114, %v160
  %v186 = vadd.f32 %v115, %v160
  %v187 = vadd.f32 %v116, %v160
  %v188 = vadd.f32 %v117, %v160
  %v189 = vadd.f32 %v118, %v160
  %v190 = vadd.f32 %v119, %v160
  %v191 = vadd.f32 %v120, %v160
  %v192 = vadd.f32 %v121, %v160
  %v193 = vadd.f32 %v122, %v160
  %v194 = vadd.f32 %v123, %v160
  %v195 = vadd.f32 %v124, %v160
  %v196 = vadd.f32 %v125, %v160
  %v197 = vadd.f32 %v126, %v160
  %v198 = vadd.f32 %v127, %v160
  %v199 = vadd.f32 %v128, %v160
  %v200 = vadd.f32 %v129, %v160
  %v201 = vadd.f32 %v130, %v160
  %v202 = vadd.f32 %v131, %v160
  %v203 = vadd.f32 %v132, %v160
  %v204 = vadd.f32 %v133, %v160
  %v205 = vadd.f32 %v134, %v160
  %v206 = vadd.f32 %v135, %v160
  %v207 = vadd.f32 %v136, %v160
  %v208 = vadd.f32 %v137, %v160
  %v209 = vadd.f32 %v138, %v160
  %v210 = vadd.f32 %v139, %v160
  %v211 = vadd.f32 %v140, %v160
  %v212 = vadd.f32 %v141, %v160
  %v213 = vadd.f32 %v142, %v160
  %v214 = vadd.f32 %v143, %v160
  %v215 = vadd.f32 %v144, %v160
  %v216 = vadd.f32 %v145, %v160
  %v217 = vadd.f32 %v146, %v160
  %v218 = vadd.f32 %v147, %v160
  %v219 = vadd.f32 %v148, %v160
  %v220 = vadd.f32 %v149, %v160
  %v221 = vadd.f32 %v150, %v160
  %v222 = vadd.f32 %v151, %v160
  %v223 = vadd.f32 %v152, %v160
  %v224 = vadd.f32 %v153, %v160
  %v225 = vadd.f32 %v154, %v160
  %v226 = vmax.f32 %v162, 0.0
  %v227 = vmax.f32 %v163, 0.0
  %v228 = vmax.f32 %v164, 0.0
  %v229 = vmax.f32 %v165, 0.0
  %v230 = vmax.f32 %v166, 0.0
  %v231 = vmax.f32 %v167, 0.0
  %v232 = vmax.f32 %v168, 0.0
  %v233 = vmax.f32 %v169, 0.0
  %v234 = vmax.f32 %v170, 0.0
  %v235 = vmax.f32 %v171, 0.0
  %v236 = vmax.f32 %v172, 0.0
  %v237 = vmax.f32 %v173, 0.0
  %v238 = vmax.f32 %v174, 0.0
  %v239 = vmax.f32 %v175, 0.0
  %v240 = vmax.f32 %v176, 0.0
  %v241 = vmax.f32 %v177, 0.0
  %v242 = vmax.f32 %v178, 0.0
  %v243 = vmax.f32 %v179, 0.0
  %v244 = vmax.f32 %v180, 0.0
  %v245 = vmax.f32 %v181, 0.0
  %v246 = vmax.f32 %v182, 0.0
  %v247 = vmax.f32 %v183, 0.0
  %v248 = vmax.f32 %v184, 0.0
  %v249 = vmax.f32 %v185, 0.0
  %v250 = vmax.f32 %v186, 0.0
  %v251 = vmax.f32 %v187, 0.0
  %v252 = vmax.f32 %v188, 0.0
  %v253 = vmax.f32 %v189, 0.0
  %v254 = vmax.f32 %v190, 0.0
  %v255 = vmax.f32 %v191, 0.0
  %v256 = vmax.f32 %v192, 0.0
  %v257 = vmax.f32 %v193, 0.0
  %v258 = vmax.f32 %v194, 0.0
  %v259 = vmax.f32 %v195, 0.0
  %v260 = vmax.f32 %v196, 0.0
  %v261 = vmax.f32 %v197, 0.0
  %v262 = vmax.f32 %v198, 0.0
  %v263 = vmax.f32 %v199, 0.0
  %v264 = vmax.f32 %v200, 0.0
  %v265 = vmax.f32 %v201, 0.0
  %v266 = vmax.f32 %v202, 0.0
  %v267 = vmax.f32 %v203, 0.0
  %v268 = vmax.f32 %v204, 0.0
  %v269 = vmax.f32 %v205, 0.0
  %v270 = vmax.f32 %v206, 0.0
  %v271 = vmax.f32 %v207, 0.0
  %v272 = vmax.f32 %v208, 0.0
  %v273 = vmax.f32 %v209, 0.0
  %v274 = vmax.f32 %v210, 0.0
  %v275 = vmax.f32 %v211, 0.0
  %v276 = vmax.f32 %v212, 0.0
  %v277 = vmax.f32 %v213, 0.0
  %v278 = vmax.f32 %v214, 0.0
  %v279 = vmax.f32 %v215, 0.0
  %v280 = vmax.f32 %v216, 0.0
  %v281 = vmax.f32 %v217, 0.0
  %v282 = vmax.f32 %v218, 0.0
  %v283 = vmax.f32 %v219, 0.0
  %v284 = vmax.f32 %v220, 0.0
  %v285 = vmax.f32 %v221, 0.0
  %v286 = vmax.f32 %v222, 0.0
  %v287 = vmax.f32 %v223, 0.0
  %v288 = vmax.f32 %v224, 0.0
  %v289 = vmax.f32 %v225, 0.0
  %v290 = vld [vmem:[%s3] sm:$0xff]
  %v291 = vld [vmem:[%s3 + $0x8] sm:$0xff]
  %v292 = vld [vmem:[%s3 + $0x10] sm:$0xff]
  %v293 = vld [vmem:[%s3 + $0x18] sm:$0xff]
  %v294 = vld [vmem:[%s3 + $0x20] sm:$0xff]
  %v295 = vld [vmem:[%s3 + $0x28] sm:$0xff]
  %v296 = vld [vmem:[%s3 + $0x30] sm:$0xff]
  %v297 = vld [vmem:[%s3 + $0x38] sm:$0xff]
  %v298 = vld [vmem:[%s3 + $0x40] sm:$0xff]
  %v299 = vld [vmem:[%s3 + $0x48] sm:$0xff]
  %v300 = vld [vmem:[%s3 + $0x50] sm:$0xff]
  %v301 = vld [vmem:[%s3 + $0x58] sm:$0xff]
  %v302 = vld [vmem:[%s3 + $0x60] sm:$0xff]
  %v303 = vld [vmem:[%s3 + $0x68] sm:$0xff]
  %v304 = vld [vmem:[%s3 + $0x70] sm:$0xff]
  %v305 = vld [vmem:[%s3 + $0x78] sm:$0xff]
  %306 = vmatprep.subr.mxu0 0.0
  %307 = vmatpush1.msra.mxu0 %v290
  %308 = vmatprep.subr.mxu0 0.0
  %309 = vmatpush1.msra.mxu0 %v291
  %310 = vmatprep.subr.mxu0 0.0
  %311 = vmatpush1.msra.mxu0 %v292
  %312 = vmatprep.subr.mxu0 0.0
  %313 = vmatpush1.msra.mxu0 %v293
  %314 = vmatprep.subr.mxu0 0.0
  %315 = vmatpush1.msra.mxu0 %v294
  %316 = vmatprep.subr.mxu0 0.0
  %317 = vmatpush1.msra.mxu0 %v295
  %318 = vmatprep.subr.mxu0 0.0
  %319 = vmatpush1.msra.mxu0 %v296
  %320 = vmatprep.subr.mxu0 0.0
  %321 = vmatpush1.msra.mxu0 %v297
  %322 = vmatprep.subr.mxu0 0.0
  %323 = vmatpush1.msra.mxu0 %v298
  %324 = vmatprep.subr.mxu0 0.0
  %325 = vmatpush1.msra.mxu0 %v299
  %326 = vmatprep.subr.mxu0 0.0
  %327 = vmatpush1.msra.mxu0 %v300
  %328 = vmatprep.subr.mxu0 0.0
  %329 = vmatpush1.msra.mxu0 %v301
  %330 = vmatprep.subr.mxu0 0.0
  %331 = vmatpush1.msra.mxu0 %v302
  %332 = vmatprep.subr.mxu0 0.0
  %333 = vmatpush1.msra.mxu0 %v303
  %334 = vmatprep.subr.mxu0 0.0
  %335 = vmatpush1.msra.mxu0 %v304
  %336 = vmatprep.subr.mxu0 0.0
  %337 = vmatpush1.msra.mxu0 %v305
  %338 = vmatprep.subr.mxu0 0.0
  %339 = vmatpush1.msra.mxu0 0.0
  %340 = vmatprep.subr.mxu0 0.0
  %341 = vmatpush1.msra.mxu0 0.0
  %342 = vmatprep.subr.mxu0 0.0
  %343 = vmatpush1.msra.mxu0 0.0
  %344 = vmatprep.subr.mxu0 0.0
  %345 = vmatpush1.msra.mxu0 0.0
  %346 = vmatprep.subr.mxu0 0.0
  %347 = vmatpush1.msra.mxu0 0.0
  %348 = vmatprep.subr.mxu0 0.0
  %349 = vmatpush1.msra.mxu0 0.0
  %350 = vmatprep.subr.mxu0 0.0
  %351 = vmatpush1.msra.mxu0 0.0
  %352 = vmatprep.subr.mxu0 0.0
  %353 = vmatpush1.msra.mxu0 0.0
  %354 = vmatprep.subr.mxu0 0.0
  %355 = vmatpush1.msra.mxu0 0.0
  %356 = vmatprep.subr.mxu0 0.0
  %357 = vmatpush1.msra.mxu0 0.0
  %358 = vmatprep.subr.mxu0 0.0
  %359 = vmatpush1.msra.mxu0 0.0
  %360 = vmatprep.subr.mxu0 0.0
  %361 = vmatpush1.msra.mxu0 0.0
  %362 = vmatprep.subr.mxu0 0.0
  %363 = vmatpush1.msra.mxu0 0.0
  %364 = vmatprep.subr.mxu0 0.0
  %365 = vmatpush1.msra.mxu0 0.0
  %366 = vmatprep.subr.mxu0 0.0
  %367 = vmatpush1.msra.mxu0 0.0
  %368 = vmatprep.subr.mxu0 0.0
  %369 = vmatpush1.msra.mxu0 0.0
  %370 = vmatprep.mubr.f32.mxu0 0.0
  %371 = vmatmul.mubr.f32.gmra.mrb[0].mxu0 %v226
  %v372 = vpop.f32.mrb[0].mxu0
  %v373 = vadd.f32 0.0, %v372
  %v374 = vpop.f32.mrb[0].mxu0
  %375 = vmatprep.mubr.f32.mxu0 0.0
  %376 = vmatmul.mubr.f32.gmra.mrb[0].mxu0 %v227
  %v377 = vpop.f32.mrb[0].mxu0
  %v378 = vadd.f32 0.0, %v377
  %v379 = vpop.f32.mrb[0].mxu0
  %380 = vmatprep.mubr.f32.mxu0 0.0
  %381 = vmatmul.mubr.f32.gmra.mrb[0].mxu0 %v228
  %v382 = vpop.f32.mrb[0].mxu0
  %v383 = vadd.f32 0.0, %v382
  %v384 = vpop.f32.mrb[0].mxu0
  %385 = vmatprep.mubr.f32.mxu0 0.0
  %386 = vmatmul.mubr.f32.gmra.mrb[0].mxu0 %v229
  %v387 = vpop.f32.mrb[0].mxu0
  %v388 = vadd.f32 0.0, %v387
  %v389 = vpop.f32.mrb[0].mxu0
  %390 = vmatprep.mubr.f32.mxu0 0.0
  %391 = vmatmul.mubr.f32.gmra.mrb[0].mxu0 %v230
  %v392 = vpop.f32.mrb[0].mxu0
  %v393 = vadd.f32 0.0, %v392
  %v394 = vpop.f32.mrb[0].mxu0
  %395 = vmatprep.mubr.f32.mxu0 0.0
  %396 = vmatmul.mubr.f32.gmra.mrb[0].mxu0 %v231
  %v397 = vpop.f32.mrb[0].mxu0
  %v398 = vadd.f32 0.0, %v397
  %v399 = vpop.f32.mrb[0].mxu0
  %400 = vmatprep.mubr.f32.mxu0 0.0
  %401 = vmatmul.mubr.f32.gmra.mrb[0].mxu0 %v232
  %v402 = vpop.f32.mrb[0].mxu0
  %v403 = vadd.f32 0.0, %v402
  %v404 = vpop.f32.mrb[0].mxu0
  %405 = vmatprep.mubr.f32.mxu0 0.0
  %406 = vmatmul.mubr.f32.gmra.mrb[0].mxu0 %v233
  %v407 = vpop.f32.mrb[0].mxu0
  %v408 = vadd.f32 0.0, %v407
  %v409 = vpop.f32.mrb[0].mxu0
  %410 = vmatprep.mubr.f32.mxu0 0.0
  %411 = vmatmul.mubr.f32.gmra.mrb[0].mxu0 %v234
  %v412 = vpop.f32.mrb[0].mxu0
  %v413 = vadd.f32 0.0, %v412
  %v414 = vpop.f32.mrb[0].mxu0
  %415 = vmatprep.mubr.f32.mxu0 0.0
  %416 = vmatmul.mubr.f32.gmra.mrb[0].mxu0 %v235
  %v417 = vpop.f32.mrb[0].mxu0
  %v418 = vadd.f32 0.0, %v417
  %v419 = vpop.f32.mrb[0].mxu0
  %420 = vmatprep.mubr.f32.mxu0 0.0
  %421 = vmatmul.mubr.f32.gmra.mrb[0].mxu0 %v236
  %v422 = vpop.f32.mrb[0].mxu0
  %v423 = vadd.f32 0.0, %v422
  %v424 = vpop.f32.mrb[0].mxu0
  %425 = vmatprep.mubr.f32.mxu0 0.0
  %426 = vmatmul.mubr.f32.gmra.mrb[0].mxu0 %v237
  %v427 = vpop.f32.mrb[0].mxu0
  %v428 = vadd.f32 0.0, %v427
  %v429 = vpop.f32.mrb[0].mxu0
  %430 = vmatprep.mubr.f32.mxu0 0.0
  %431 = vmatmul.mubr.f32.gmra.mrb[0].mxu0 %v238
  %v432 = vpop.f32.mrb[0].mxu0
  %v433 = vadd.f32 0.0, %v432
  %v434 = vpop.f32.mrb[0].mxu0
  %435 = vmatprep.mubr.f32.mxu0 0.0
  %436 = vmatmul.mubr.f32.gmra.mrb[0].mxu0 %v239
  %v437 = vpop.f32.mrb[0].mxu0
  %v438 = vadd.f32 0.0, %v437
  %v439 = vpop.f32.mrb[0].mxu0
  %440 = vmatprep.mubr.f32.mxu0 0.0
  %441 = vmatmul.mubr.f32.gmra.mrb[0].mxu0 %v240
  %v442 = vpop.f32.mrb[0].mxu0
  %v443 = vadd.f32 0.0, %v442
  %v444 = vpop.f32.mrb[0].mxu0
  %445 = vmatprep.mubr.f32.mxu0 0.0
  %446 = vmatmul.mubr.f32.gmra.mrb[0].mxu0 %v241
  %v447 = vpop.f32.mrb[0].mxu0
  %v448 = vadd.f32 0.0, %v447
  %v449 = vpop.f32.mrb[0].mxu0
  %450 = vmatprep.mubr.f32.mxu0 0.0
  %451 = vmatmul.mubr.f32.gmra.mrb[0].mxu0 %v242
  %v452 = vpop.f32.mrb[0].mxu0
  %v453 = vadd.f32 0.0, %v452
  %v454 = vpop.f32.mrb[0].mxu0
  %455 = vmatprep.mubr.f32.mxu0 0.0
  %456 = vmatmul.mubr.f32.gmra.mrb[0].mxu0 %v243
  %v457 = vpop.f32.mrb[0].mxu0
  %v458 = vadd.f32 0.0, %v457
  %v459 = vpop.f32.mrb[0].mxu0
  %460 = vmatprep.mubr.f32.mxu0 0.0
  %461 = vmatmul.mubr.f32.gmra.mrb[0].mxu0 %v244
  %v462 = vpop.f32.mrb[0].mxu0
  %v463 = vadd.f32 0.0, %v462
  %v464 = vpop.f32.mrb[0].mxu0
  %465 = vmatprep.mubr.f32.mxu0 0.0
  %466 = vmatmul.mubr.f32.gmra.mrb[0].mxu0 %v245
  %v467 = vpop.f32.mrb[0].mxu0
  %v468 = vadd.f32 0.0, %v467
  %v469 = vpop.f32.mrb[0].mxu0
  %470 = vmatprep.mubr.f32.mxu0 0.0
  %471 = vmatmul.mubr.f32.gmra.mrb[0].mxu0 %v246
  %v472 = vpop.f32.mrb[0].mxu0
  %v473 = vadd.f32 0.0, %v472
  %v474 = vpop.f32.mrb[0].mxu0
  %475 = vmatprep.mubr.f32.mxu0 0.0
  %476 = vmatmul.mubr.f32.gmra.mrb[0].mxu0 %v247
  %v477 = vpop.f32.mrb[0].mxu0
  %v478 = vadd.f32 0.0, %v477
  %v479 = vpop.f32.mrb[0].mxu0
  %480 = vmatprep.mubr.f32.mxu0 0.0
  %481 = vmatmul.mubr.f32.gmra.mrb[0].mxu0 %v248
  %v482 = vpop.f32.mrb[0].mxu0
  %v483 = vadd.f32 0.0, %v482
  %v484 = vpop.f32.mrb[0].mxu0
  %485 = vmatprep.mubr.f32.mxu0 0.0
  %486 = vmatmul.mubr.f32.gmra.mrb[0].mxu0 %v249
  %v487 = vpop.f32.mrb[0].mxu0
  %v488 = vadd.f32 0.0, %v487
  %v489 = vpop.f32.mrb[0].mxu0
  %490 = vmatprep.mubr.f32.mxu0 0.0
  %491 = vmatmul.mubr.f32.gmra.mrb[0].mxu0 %v250
  %v492 = vpop.f32.mrb[0].mxu0
  %v493 = vadd.f32 0.0, %v492
  %v494 = vpop.f32.mrb[0].mxu0
  %495 = vmatprep.mubr.f32.mxu0 0.0
  %496 = vmatmul.mubr.f32.gmra.mrb[0].mxu0 %v251
  %v497 = vpop.f32.mrb[0].mxu0
  %v498 = vadd.f32 0.0, %v497
  %v499 = vpop.f32.mrb[0].mxu0
  %500 = vmatprep.mubr.f32.mxu0 0.0
  %501 = vmatmul.mubr.f32.gmra.mrb[0].mxu0 %v252
  %v502 = vpop.f32.mrb[0].mxu0
  %v503 = vadd.f32 0.0, %v502
  %v504 = vpop.f32.mrb[0].mxu0
  %505 = vmatprep.mubr.f32.mxu0 0.0
  %506 = vmatmul.mubr.f32.gmra.mrb[0].mxu0 %v253
  %v507 = vpop.f32.mrb[0].mxu0
  %v508 = vadd.f32 0.0, %v507
  %v509 = vpop.f32.mrb[0].mxu0
  %510 = vmatprep.mubr.f32.mxu0 0.0
  %511 = vmatmul.mubr.f32.gmra.mrb[0].mxu0 %v254
  %v512 = vpop.f32.mrb[0].mxu0
  %v513 = vadd.f32 0.0, %v512
  %v514 = vpop.f32.mrb[0].mxu0
  %515 = vmatprep.mubr.f32.mxu0 0.0
  %516 = vmatmul.mubr.f32.gmra.mrb[0].mxu0 %v255
  %v517 = vpop.f32.mrb[0].mxu0
  %v518 = vadd.f32 0.0, %v517
  %v519 = vpop.f32.mrb[0].mxu0
  %520 = vmatprep.mubr.f32.mxu0 0.0
  %521 = vmatmul.mubr.f32.gmra.mrb[0].mxu0 %v256
  %v522 = vpop.f32.mrb[0].mxu0
  %v523 = vadd.f32 0.0, %v522
  %v524 = vpop.f32.mrb[0].mxu0
  %525 = vmatprep.mubr.f32.mxu0 0.0
  %526 = vmatmul.mubr.f32.gmra.mrb[0].mxu0 %v257
  %v527 = vpop.f32.mrb[0].mxu0
  %v528 = vadd.f32 0.0, %v527
  %v529 = vpop.f32.mrb[0].mxu0
  %530 = vmatprep.mubr.f32.mxu0 0.0
  %531 = vmatmul.mubr.f32.gmra.mrb[0].mxu0 %v258
  %v532 = vpop.f32.mrb[0].mxu0
  %v533 = vadd.f32 0.0, %v532
  %v534 = vpop.f32.mrb[0].mxu0
  %535 = vmatprep.mubr.f32.mxu0 0.0
  %536 = vmatmul.mubr.f32.gmra.mrb[0].mxu0 %v259
  %v537 = vpop.f32.mrb[0].mxu0
  %v538 = vadd.f32 0.0, %v537
  %v539 = vpop.f32.mrb[0].mxu0
  %540 = vmatprep.mubr.f32.mxu0 0.0
  %541 = vmatmul.mubr.f32.gmra.mrb[0].mxu0 %v260
  %v542 = vpop.f32.mrb[0].mxu0
  %v543 = vadd.f32 0.0, %v542
  %v544 = vpop.f32.mrb[0].mxu0
  %545 = vmatprep.mubr.f32.mxu0 0.0
  %546 = vmatmul.mubr.f32.gmra.mrb[0].mxu0 %v261
  %v547 = vpop.f32.mrb[0].mxu0
  %v548 = vadd.f32 0.0, %v547
  %v549 = vpop.f32.mrb[0].mxu0
  %550 = vmatprep.mubr.f32.mxu0 0.0
  %551 = vmatmul.mubr.f32.gmra.mrb[0].mxu0 %v262
  %v552 = vpop.f32.mrb[0].mxu0
  %v553 = vadd.f32 0.0, %v552
  %v554 = vpop.f32.mrb[0].mxu0
  %555 = vmatprep.mubr.f32.mxu0 0.0
  %556 = vmatmul.mubr.f32.gmra.mrb[0].mxu0 %v263
  %v557 = vpop.f32.mrb[0].mxu0
  %v558 = vadd.f32 0.0, %v557
  %v559 = vpop.f32.mrb[0].mxu0
  %560 = vmatprep.mubr.f32.mxu0 0.0
  %561 = vmatmul.mubr.f32.gmra.mrb[0].mxu0 %v264
  %v562 = vpop.f32.mrb[0].mxu0
  %v563 = vadd.f32 0.0, %v562
  %v564 = vpop.f32.mrb[0].mxu0
  %565 = vmatprep.mubr.f32.mxu0 0.0
  %566 = vmatmul.mubr.f32.gmra.mrb[0].mxu0 %v265
  %v567 = vpop.f32.mrb[0].mxu0
  %v568 = vadd.f32 0.0, %v567
  %v569 = vpop.f32.mrb[0].mxu0
  %570 = vmatprep.mubr.f32.mxu0 0.0
  %571 = vmatmul.mubr.f32.gmra.mrb[0].mxu0 %v266
  %v572 = vpop.f32.mrb[0].mxu0
  %v573 = vadd.f32 0.0, %v572
  %v574 = vpop.f32.mrb[0].mxu0
  %575 = vmatprep.mubr.f32.mxu0 0.0
  %576 = vmatmul.mubr.f32.gmra.mrb[0].mxu0 %v267
  %v577 = vpop.f32.mrb[0].mxu0
  %v578 = vadd.f32 0.0, %v577
  %v579 = vpop.f32.mrb[0].mxu0
  %580 = vmatprep.mubr.f32.mxu0 0.0
  %581 = vmatmul.mubr.f32.gmra.mrb[0].mxu0 %v268
  %v582 = vpop.f32.mrb[0].mxu0
  %v583 = vadd.f32 0.0, %v582
  %v584 = vpop.f32.mrb[0].mxu0
  %585 = vmatprep.mubr.f32.mxu0 0.0
  %586 = vmatmul.mubr.f32.gmra.mrb[0].mxu0 %v269
  %v587 = vpop.f32.mrb[0].mxu0
  %v588 = vadd.f32 0.0, %v587
  %v589 = vpop.f32.mrb[0].mxu0
  %590 = vmatprep.mubr.f32.mxu0 0.0
  %591 = vmatmul.mubr.f32.gmra.mrb[0].mxu0 %v270
  %v592 = vpop.f32.mrb[0].mxu0
  %v593 = vadd.f32 0.0, %v592
  %v594 = vpop.f32.mrb[0].mxu0
  %595 = vmatprep.mubr.f32.mxu0 0.0
  %596 = vmatmul.mubr.f32.gmra.mrb[0].mxu0 %v271
  %v597 = vpop.f32.mrb[0].mxu0
  %v598 = vadd.f32 0.0, %v597
  %v599 = vpop.f32.mrb[0].mxu0
  %600 = vmatprep.mubr.f32.mxu0 0.0
  %601 = vmatmul.mubr.f32.gmra.mrb[0].mxu0 %v272
  %v602 = vpop.f32.mrb[0].mxu0
  %v603 = vadd.f32 0.0, %v602
  %v604 = vpop.f32.mrb[0].mxu0
  %605 = vmatprep.mubr.f32.mxu0 0.0
  %606 = vmatmul.mubr.f32.gmra.mrb[0].mxu0 %v273
  %v607 = vpop.f32.mrb[0].mxu0
  %v608 = vadd.f32 0.0, %v607
  %v609 = vpop.f32.mrb[0].mxu0
  %610 = vmatprep.mubr.f32.mxu0 0.0
  %611 = vmatmul.mubr.f32.gmra.mrb[0].mxu0 %v274
  %v612 = vpop.f32.mrb[0].mxu0
  %v613 = vadd.f32 0.0, %v612
  %v614 = vpop.f32.mrb[0].mxu0
  %615 = vmatprep.mubr.f32.mxu0 0.0
  %616 = vmatmul.mubr.f32.gmra.mrb[0].mxu0 %v275
  %v617 = vpop.f32.mrb[0].mxu0
  %v618 = vadd.f32 0.0, %v617
  %v619 = vpop.f32.mrb[0].mxu0
  %620 = vmatprep.mubr.f32.mxu0 0.0
  %621 = vmatmul.mubr.f32.gmra.mrb[0].mxu0 %v276
  %v622 = vpop.f32.mrb[0].mxu0
  %v623 = vadd.f32 0.0, %v622
  %v624 = vpop.f32.mrb[0].mxu0
  %625 = vmatprep.mubr.f32.mxu0 0.0
  %626 = vmatmul.mubr.f32.gmra.mrb[0].mxu0 %v277
  %v627 = vpop.f32.mrb[0].mxu0
  %v628 = vadd.f32 0.0, %v627
  %v629 = vpop.f32.mrb[0].mxu0
  %630 = vmatprep.mubr.f32.mxu0 0.0
  %631 = vmatmul.mubr.f32.gmra.mrb[0].mxu0 %v278
  %v632 = vpop.f32.mrb[0].mxu0
  %v633 = vadd.f32 0.0, %v632
  %v634 = vpop.f32.mrb[0].mxu0
  %635 = vmatprep.mubr.f32.mxu0 0.0
  %636 = vmatmul.mubr.f32.gmra.mrb[0].mxu0 %v279
  %v637 = vpop.f32.mrb[0].mxu0
  %v638 = vadd.f32 0.0, %v637
  %v639 = vpop.f32.mrb[0].mxu0
  %640 = vmatprep.mubr.f32.mxu0 0.0
  %641 = vmatmul.mubr.f32.gmra.mrb[0].mxu0 %v280
  %v642 = vpop.f32.mrb[0].mxu0
  %v643 = vadd.f32 0.0, %v642
  %v644 = vpop.f32.mrb[0].mxu0
  %645 = vmatprep.mubr.f32.mxu0 0.0
  %646 = vmatmul.mubr.f32.gmra.mrb[0].mxu0 %v281
  %v647 = vpop.f32.mrb[0].mxu0
  %v648 = vadd.f32 0.0, %v647
  %v649 = vpop.f32.mrb[0].mxu0
  %650 = vmatprep.mubr.f32.mxu0 0.0
  %651 = vmatmul.mubr.f32.gmra.mrb[0].mxu0 %v282
  %v652 = vpop.f32.mrb[0].mxu0
  %v653 = vadd.f32 0.0, %v652
  %v654 = vpop.f32.mrb[0].mxu0
  %655 = vmatprep.mubr.f32.mxu0 0.0
  %656 = vmatmul.mubr.f32.gmra.mrb[0].mxu0 %v283
  %v657 = vpop.f32.mrb[0].mxu0
  %v658 = vadd.f32 0.0, %v657
  %v659 = vpop.f32.mrb[0].mxu0
  %660 = vmatprep.mubr.f32.mxu0 0.0
  %661 = vmatmul.mubr.f32.gmra.mrb[0].mxu0 %v284
  %v662 = vpop.f32.mrb[0].mxu0
  %v663 = vadd.f32 0.0, %v662
  %v664 = vpop.f32.mrb[0].mxu0
  %665 = vmatprep.mubr.f32.mxu0 0.0
  %666 = vmatmul.mubr.f32.gmra.mrb[0].mxu0 %v285
  %v667 = vpop.f32.mrb[0].mxu0
  %v668 = vadd.f32 0.0, %v667
  %v669 = vpop.f32.mrb[0].mxu0
  %670 = vmatprep.mubr.f32.mxu0 0.0
  %671 = vmatmul.mubr.f32.gmra.mrb[0].mxu0 %v286
  %v672 = vpop.f32.mrb[0].mxu0
  %v673 = vadd.f32 0.0, %v672
  %v674 = vpop.f32.mrb[0].mxu0
  %675 = vmatprep.mubr.f32.mxu0 0.0
  %676 = vmatmul.mubr.f32.gmra.mrb[0].mxu0 %v287
  %v677 = vpop.f32.mrb[0].mxu0
  %v678 = vadd.f32 0.0, %v677
  %v679 = vpop.f32.mrb[0].mxu0
  %680 = vmatprep.mubr.f32.mxu0 0.0
  %681 = vmatmul.mubr.f32.gmra.mrb[0].mxu0 %v288
  %v682 = vpop.f32.mrb[0].mxu0
  %v683 = vadd.f32 0.0, %v682
  %v684 = vpop.f32.mrb[0].mxu0
  %685 = vmatprep.mubr.f32.mxu0 0.0
  %686 = vmatmul.mubr.f32.gmra.mrb[0].mxu0 %v289
  %v687 = vpop.f32.mrb[0].mxu0
  %v688 = vadd.f32 0.0, %v687
  %v689 = vpop.f32.mrb[0].mxu0
  %690 = vdwg.mxu0
  %691 = vst [vmem:[%s4] sm:$0xff] %v373
  %692 = vst [vmem:[%s4 + $0x8] sm:$0xff] %v378
  %693 = vst [vmem:[%s4 + $0x10] sm:$0xff] %v383
  %694 = vst [vmem:[%s4 + $0x18] sm:$0xff] %v388
  %695 = vst [vmem:[%s4 + $0x20] sm:$0xff] %v393
  %696 = vst [vmem:[%s4 + $0x28] sm:$0xff] %v398
  %697 = vst [vmem:[%s4 + $0x30] sm:$0xff] %v403
  %698 = vst [vmem:[%s4 + $0x38] sm:$0xff] %v408
  %699 = vst [vmem:[%s4 + $0x40] sm:$0xff] %v413
  %700 = vst [vmem:[%s4 + $0x48] sm:$0xff] %v418
  %701 = vst [vmem:[%s4 + $0x50] sm:$0xff] %v423
  %702 = vst [vmem:[%s4 + $0x58] sm:$0xff] %v428
  %703 = vst [vmem:[%s4 + $0x60] sm:$0xff] %v433
  %704 = vst [vmem:[%s4 + $0x68] sm:$0xff] %v438
  %705 = vst [vmem:[%s4 + $0x70] sm:$0xff] %v443
  %706 = vst [vmem:[%s4 + $0x78] sm:$0xff] %v448
  %707 = vst [vmem:[%s4 + $0x80] sm:$0xff] %v453
  %708 = vst [vmem:[%s4 + $0x88] sm:$0xff] %v458
  %709 = vst [vmem:[%s4 + $0x90] sm:$0xff] %v463
  %710 = vst [vmem:[%s4 + $0x98] sm:$0xff] %v468
  %711 = vst [vmem:[%s4 + $0xa0] sm:$0xff] %v473
  %712 = vst [vmem:[%s4 + $0xa8] sm:$0xff] %v478
  %713 = vst [vmem:[%s4 + $0xb0] sm:$0xff] %v483
  %714 = vst [vmem:[%s4 + $0xb8] sm:$0xff] %v488
  %715 = vst [vmem:[%s4 + $0xc0] sm:$0xff] %v493
  %716 = vst [vmem:[%s4 + $0xc8] sm:$0xff] %v498
  %717 = vst [vmem:[%s4 + $0xd0] sm:$0xff] %v503
  %718 = vst [vmem:[%s4 + $0xd8] sm:$0xff] %v508
  %719 = vst [vmem:[%s4 + $0xe0] sm:$0xff] %v513
  %720 = vst [vmem:[%s4 + $0xe8] sm:$0xff] %v518
  %721 = vst [vmem:[%s4 + $0xf0] sm:$0xff] %v523
  %722 = vst [vmem:[%s4 + $0xf8] sm:$0xff] %v528
  %723 = vst [vmem:[%s4 + $0x100] sm:$0xff] %v533
  %724 = vst [vmem:[%s4 + $0x108] sm:$0xff] %v538
  %725 = vst [vmem:[%s4 + $0x110] sm:$0xff] %v543
  %726 = vst [vmem:[%s4 + $0x118] sm:$0xff] %v548
  %727 = vst [vmem:[%s4 + $0x120] sm:$0xff] %v553
  %728 = vst [vmem:[%s4 + $0x128] sm:$0xff] %v558
  %729 = vst [vmem:[%s4 + $0x130] sm:$0xff] %v563
  %730 = vst [vmem:[%s4 + $0x138] sm:$0xff] %v568
  %731 = vst [vmem:[%s4 + $0x140] sm:$0xff] %v573
  %732 = vst [vmem:[%s4 + $0x148] sm:$0xff] %v578
  %733 = vst [vmem:[%s4 + $0x150] sm:$0xff] %v583
  %734 = vst [vmem:[%s4 + $0x158] sm:$0xff] %v588
  %735 = vst [vmem:[%s4 + $0x160] sm:$0xff] %v593
  %736 = vst [vmem:[%s4 + $0x168] sm:$0xff] %v598
  %737 = vst [vmem:[%s4 + $0x170] sm:$0xff] %v603
  %738 = vst [vmem:[%s4 + $0x178] sm:$0xff] %v608
  %739 = vst [vmem:[%s4 + $0x180] sm:$0xff] %v613
  %740 = vst [vmem:[%s4 + $0x188] sm:$0xff] %v618
  %741 = vst [vmem:[%s4 + $0x190] sm:$0xff] %v623
  %742 = vst [vmem:[%s4 + $0x198] sm:$0xff] %v628
  %743 = vst [vmem:[%s4 + $0x1a0] sm:$0xff] %v633
  %744 = vst [vmem:[%s4 + $0x1a8] sm:$0xff] %v638
  %745 = vst [vmem:[%s4 + $0x1b0] sm:$0xff] %v643
  %746 = vst [vmem:[%s4 + $0x1b8] sm:$0xff] %v648
  %747 = vst [vmem:[%s4 + $0x1c0] sm:$0xff] %v653
  %748 = vst [vmem:[%s4 + $0x1c8] sm:$0xff] %v658
  %749 = vst [vmem:[%s4 + $0x1d0] sm:$0xff] %v663
  %750 = vst [vmem:[%s4 + $0x1d8] sm:$0xff] %v668
  %751 = vst [vmem:[%s4 + $0x1e0] sm:$0xff] %v673
  %752 = vst [vmem:[%s4 + $0x1e8] sm:$0xff] %v678
  %753 = vst [vmem:[%s4 + $0x1f0] sm:$0xff] %v683
  %754 = vst [vmem:[%s4 + $0x1f8] sm:$0xff] %v688
  %v755 = vadd.f32 %v373, %v378
  %v756 = vadd.f32 %v755, %v383
  %v757 = vadd.f32 %v756, %v388
  %v758 = vadd.f32 %v757, %v393
  %v759 = vadd.f32 %v758, %v398
  %v760 = vadd.f32 %v759, %v403
  %v761 = vadd.f32 %v760, %v408
  %v762 = vadd.f32 %v761, %v413
  %v763 = vadd.f32 %v762, %v418
  %v764 = vadd.f32 %v763, %v423
  %v765 = vadd.f32 %v764, %v428
  %v766 = vadd.f32 %v765, %v433
  %v767 = vadd.f32 %v766, %v438
  %v768 = vadd.f32 %v767, %v443
  %v769 = vadd.f32 %v768, %v448
  %v770 = vadd.f32 %v769, %v453
  %v771 = vadd.f32 %v770, %v458
  %v772 = vadd.f32 %v771, %v463
  %v773 = vadd.f32 %v772, %v468
  %v774 = vadd.f32 %v773, %v473
  %v775 = vadd.f32 %v774, %v478
  %v776 = vadd.f32 %v775, %v483
  %v777 = vadd.f32 %v776, %v488
  %v778 = vadd.f32 %v777, %v493
  %v779 = vadd.f32 %v778, %v498
  %v780 = vadd.f32 %v779, %v503
  %v781 = vadd.f32 %v780, %v508
  %v782 = vadd.f32 %v781, %v513
  %v783 = vadd.f32 %v782, %v518
  %v784 = vadd.f32 %v783, %v523
  %v785 = vadd.f32 %v784, %v528
  %v786 = vadd.f32 %v785, %v533
  %v787 = vadd.f32 %v786, %v538
  %v788 = vadd.f32 %v787, %v543
  %v789 = vadd.f32 %v788, %v548
  %v790 = vadd.f32 %v789, %v553
  %v791 = vadd.f32 %v790, %v558
  %v792 = vadd.f32 %v791, %v563
  %v793 = vadd.f32 %v792, %v568
  %v794 = vadd.f32 %v793, %v573
  %v795 = vadd.f32 %v794, %v578
  %v796 = vadd.f32 %v795, %v583
  %v797 = vadd.f32 %v796, %v588
  %v798 = vadd.f32 %v797, %v593
  %v799 = vadd.f32 %v798, %v598
  %v800 = vadd.f32 %v799, %v603
  %v801 = vadd.f32 %v800, %v608
  %v802 = vadd.f32 %v801, %v613
  %v803 = vadd.f32 %v802, %v618
  %v804 = vadd.f32 %v803, %v623
  %v805 = vadd.f32 %v804, %v628
  %v806 = vadd.f32 %v805, %v633
  %v807 = vadd.f32 %v806, %v638
  %v808 = vadd.f32 %v807, %v643
  %v809 = vadd.f32 %v808, %v648
  %v810 = vadd.f32 %v809, %v653
  %v811 = vadd.f32 %v810, %v658
  %v812 = vadd.f32 %v811, %v663
  %v813 = vadd.f32 %v812, %v668
  %v814 = vadd.f32 %v813, %v673
  %v815 = vadd.f32 %v814, %v678
  %v816 = vadd.f32 %v815, %v683
  %v817 = vadd.f32 %v816, %v688
  %v818 = vrot.slane %v817, 4
  %v819 = vadd.f32 %v817, %v818
  %v820 = vrot.slane %v819, 2
  %v821 = vadd.f32 %v819, %v820
  %v822 = vrot.slane %v821, 1
  %v823 = vadd.f32 %v821, %v822
  %824 = vst [vmem:[%s5] sm:$0x1] %v823
  %v825 = vmul.f32 %v373, %v373
  %v826 = vmul.f32 %v378, %v378
  %v827 = vmul.f32 %v383, %v383
  %v828 = vmul.f32 %v388, %v388
  %v829 = vmul.f32 %v393, %v393
  %v830 = vmul.f32 %v398, %v398
  %v831 = vmul.f32 %v403, %v403
  %v832 = vmul.f32 %v408, %v408
  %v833 = vmul.f32 %v413, %v413
  %v834 = vmul.f32 %v418, %v418
  %v835 = vmul.f32 %v423, %v423
  %v836 = vmul.f32 %v428, %v428
  %v837 = vmul.f32 %v433, %v433
  %v838 = vmul.f32 %v438, %v438
  %v839 = vmul.f32 %v443, %v443
  %v840 = vmul.f32 %v448, %v448
  %v841 = vmul.f32 %v453, %v453
  %v842 = vmul.f32 %v458, %v458
  %v843 = vmul.f32 %v463, %v463
  %v844 = vmul.f32 %v468, %v468
  %v845 = vmul.f32 %v473, %v473
  %v846 = vmul.f32 %v478, %v478
  %v847 = vmul.f32 %v483, %v483
  %v848 = vmul.f32 %v488, %v488
  %v849 = vmul.f32 %v493, %v493
  %v850 = vmul.f32 %v498, %v498
  %v851 = vmul.f32 %v503, %v503
  %v852 = vmul.f32 %v508, %v508
  %v853 = vmul.f32 %v513, %v513
  %v854 = vmul.f32 %v518, %v518
  %v855 = vmul.f32 %v523, %v523
  %v856 = vmul.f32 %v528, %v528
  %v857 = vmul.f32 %v533, %v533
  %v858 = vmul.f32 %v538, %v538
  %v859 = vmul.f32 %v543, %v543
  %v860 = vmul.f32 %v548, %v548
  %v861 = vmul.f32 %v553, %v553
  %v862 = vmul.f32 %v558, %v558
  %v863 = vmul.f32 %v563, %v563
  %v864 = vmul.f32 %v568, %v568
  %v865 = vmul.f32 %v573, %v573
  %v866 = vmul.f32 %v578, %v578
  %v867 = vmul.f32 %v583, %v583
  %v868 = vmul.f32 %v588, %v588
  %v869 = vmul.f32 %v593, %v593
  %v870 = vmul.f32 %v598, %v598
  %v871 = vmul.f32 %v603, %v603
  %v872 = vmul.f32 %v608, %v608
  %v873 = vmul.f32 %v613, %v613
  %v874 = vmul.f32 %v618, %v618
  %v875 = vmul.f32 %v623, %v623
  %v876 = vmul.f32 %v628, %v628
  %v877 = vmul.f32 %v633, %v633
  %v878 = vmul.f32 %v638, %v638
  %v879 = vmul.f32 %v643, %v643
  %v880 = vmul.f32 %v648, %v648
  %v881 = vmul.f32 %v653, %v653
  %v882 = vmul.f32 %v658, %v658
  %v883 = vmul.f32 %v663, %v663
  %v884 = vmul.f32 %v668, %v668
  %v885 = vmul.f32 %v673, %v673
  %v886 = vmul.f32 %v678, %v678
  %v887 = vmul.f32 %v683, %v683
  %v888 = vmul.f32 %v688, %v688
  %v889 = vadd.f32 %v825, %v826
  %v890 = vadd.f32 %v889, %v827
  %v891 = vadd.f32 %v890, %v828
  %v892 = vadd.f32 %v891, %v829
  %v893 = vadd.f32 %v892, %v830
  %v894 = vadd.f32 %v893, %v831
  %v895 = vadd.f32 %v894, %v832
  %v896 = vadd.f32 %v895, %v833
  %v897 = vadd.f32 %v896, %v834
  %v898 = vadd.f32 %v897, %v835
  %v899 = vadd.f32 %v898, %v836
  %v900 = vadd.f32 %v899, %v837
  %v901 = vadd.f32 %v900, %v838
  %v902 = vadd.f32 %v901, %v839
  %v903 = vadd.f32 %v902, %v840
  %v904 = vadd.f32 %v903, %v841
  %v905 = vadd.f32 %v904, %v842
  %v906 = vadd.f32 %v905, %v843
  %v907 = vadd.f32 %v906, %v844
  %v908 = vadd.f32 %v907, %v845
  %v909 = vadd.f32 %v908, %v846
  %v910 = vadd.f32 %v909, %v847
  %v911 = vadd.f32 %v910, %v848
  %v912 = vadd.f32 %v911, %v849
  %v913 = vadd.f32 %v912, %v850
  %v914 = vadd.f32 %v913, %v851
  %v915 = vadd.f32 %v914, %v852
  %v916 = vadd.f32 %v915, %v853
  %v917 = vadd.f32 %v916, %v854
  %v918 = vadd.f32 %v917, %v855
  %v919 = vadd.f32 %v918, %v856
  %v920 = vadd.f32 %v919, %v857
  %v921 = vadd.f32 %v920, %v858
  %v922 = vadd.f32 %v921, %v859
  %v923 = vadd.f32 %v922, %v860
  %v924 = vadd.f32 %v923, %v861
  %v925 = vadd.f32 %v924, %v862
  %v926 = vadd.f32 %v925, %v863
  %v927 = vadd.f32 %v926, %v864
  %v928 = vadd.f32 %v927, %v865
  %v929 = vadd.f32 %v928, %v866
  %v930 = vadd.f32 %v929, %v867
  %v931 = vadd.f32 %v930, %v868
  %v932 = vadd.f32 %v931, %v869
  %v933 = vadd.f32 %v932, %v870
  %v934 = vadd.f32 %v933, %v871
  %v935 = vadd.f32 %v934, %v872
  %v936 = vadd.f32 %v935, %v873
  %v937 = vadd.f32 %v936, %v874
  %v938 = vadd.f32 %v937, %v875
  %v939 = vadd.f32 %v938, %v876
  %v940 = vadd.f32 %v939, %v877
  %v941 = vadd.f32 %v940, %v878
  %v942 = vadd.f32 %v941, %v879
  %v943 = vadd.f32 %v942, %v880
  %v944 = vadd.f32 %v943, %v881
  %v945 = vadd.f32 %v944, %v882
  %v946 = vadd.f32 %v945, %v883
  %v947 = vadd.f32 %v946, %v884
  %v948 = vadd.f32 %v947, %v885
  %v949 = vadd.f32 %v948, %v886
  %v950 = vadd.f32 %v949, %v887
  %v951 = vadd.f32 %v950, %v888
  %v952 = vrot.slane %v951, 4
  %v953 = vadd.f32 %v951, %v952
  %v954 = vrot.slane %v953, 2
  %v955 = vadd.f32 %v953, %v954
  %v956 = vrot.slane %v955, 1
  %v957 = vadd.f32 %v955, %v956
  %958 = vst [vmem:[%s6] sm:$0x1] %v957
  // Predicated region
  $region18: #{_preact_bottleneck_jit.3} parent=0 // pred_check
    _
  $region19: #{_preact_bottleneck_jit.3} parent=0 // pred_check_branch
    %960 = sbr.rel (0) target = $region21
  $region20: #{_preact_bottleneck_jit.3} parent=0 // pred_region
    _
  $region21: #{_preact_bottleneck_jit.3} parent=0 // pred_fallthru
    _
  // Predicated region
  $region22: #{_preact_bottleneck_jit.3} parent=0 // pred_check
    _
  $region23: #{_preact_bottleneck_jit.3} parent=0 // pred_check_branch
    %962 = sbr.rel (0) target = $region25
  $region24: #{_preact_bottleneck_jit.3} parent=0 // pred_region
    _
  $region25: #{_preact_bottleneck_jit.3} parent=0 // pred_fallthru
    _
  // Predicated region
  $region26: #{_preact_bottleneck_jit.3} parent=0 // pred_check
    _
  $region27: #{_preact_bottleneck_jit.3} parent=0 // pred_check_branch
    %964 = sbr.rel (0) target = $region29
  $region28: #{_preact_bottleneck_jit.3} parent=0 // pred_region
    _
  $region29: #{_preact_bottleneck_jit.3} parent=0 // pred_fallthru
    _
  // Predicated region
  $region30: #{_preact_bottleneck_jit.3} parent=0 // pred_check
    _
  $region31: #{_preact_bottleneck_jit.3} parent=0 // pred_check_branch
    %966 = sbr.rel (0) target = $region33
  $region32: #{_preact_bottleneck_jit.3} parent=0 // pred_region
    _
  $region33: #{_preact_bottleneck_jit.3} parent=0 // pred_fallthru
    _
  // Predicated region
  $region34: #{_preact_bottleneck_jit.3} parent=0 // pred_check
    _
  $region35: #{_preact_bottleneck_jit.3} parent=0 // pred_check_branch
    %968 = sbr.rel (0) target = $region37
  $region36: #{_preact_bottleneck_jit.3} parent=0 // pred_region
    _
  $region37: #{_preact_bottleneck_jit.3} parent=0 // pred_fallthru
    _
  // Predicated region
  $region38: #{_preact_bottleneck_jit.3} parent=0 // pred_check
    _
  $region39: #{_preact_bottleneck_jit.3} parent=0 // pred_check_branch
    %970 = sbr.rel (0) target = $region41
  $region40: #{_preact_bottleneck_jit.3} parent=0 // pred_region
    _
  $region41: #{_preact_bottleneck_jit.3} parent=0 // pred_fallthru
    _

// kernel: _preact_bottleneck_jit.4
$region0: #{_preact_bottleneck_jit.4}
  #allocation0 [shape = 'u32[]', space=smem, size = 0x4, offset = 0x4, fixed_abs, tag = 'smem constant byte address 0x4 - core index']
  #allocation1 [shape = 'u32[144,128]{1,0:T(1,128)}', space=vmem, size = 0x12000, scoped, tag = 'internal scratch']
  #allocation2 [shape = 'f32[128,128]{1,0:T(8,128)}', space=vmem, size = 0x10000, scoped, tag = 'scratch operand']
  %s0 = inlined_call_operand.vmem [shape: f32[128,1152], index: 0, kind: input, shape index: {}]
  %s1 = inlined_call_operand.vmem [shape: f32[1152,128], index: 1, kind: input, shape index: {}]
  %s2 = inlined_call_operand.vmem [shape: f32[128,128], index: 2, kind: output, shape index: {0}]
  %s3 = inlined_call_operand.vmem [shape: f32[1,1,128], index: 3, kind: output, shape index: {1}]
  %s4 = inlined_call_operand.vmem [shape: f32[1,1,128], index: 4, kind: output, shape index: {2}]
  %5 = xla_tuple %s2, %s3, %s4
  %s6 = sld [smem:[#allocation0]]
  $region103: #{_preact_bottleneck_jit.4} parent=0
    _
  %s8 = ssub.s32 1, %s6
  %s9 = scalar_select 0, %s8, %s6
  $region1: #{_preact_bottleneck_jit.4} parent=0
    #allocation3 [shape = 'u8[131072]{0}', space=vmem, size = 0x20000, scoped, tag = 'input window, operand 0']
    loop: start=0, step=1, limit=11
    $region2: #{_preact_bottleneck_jit.4} parent=1 // loop_pre_header
      _
    $region3: #{_preact_bottleneck_jit.4} parent=1 // loop_header
      %s11 = sphi 0, %s15
      %p12 = scmp.ge.s32.totalorder %s11, 11
      %s18 = sphi 0, %s30
      %s19 = sphi 0, %s26
      %s20 = sphi 0, %s18
      %s21 = sphi 0, %s19
      %s22 = sphi 0, %s20
      %s23 = sphi 0, %s21
      %s35 = sphi 0, %s37
      %s38 = sphi 0, %s35
      %s39 = sphi 0, %s38
      %s55 = sphi 0, %s39
      %s61 = sphi 0, %s63
      %s64 = sphi 0, %s61
      %s65 = sphi 0, %s64
      %s81 = sphi 0, %s65
      %s87 = sphi 0, %s89
      %s90 = sphi 0, %s87
      %s91 = sphi 0, %s90
      %s107 = sphi 0, %s91
      %s113 = sphi 0, %s115
      %s116 = sphi 0, %s113
      %s117 = sphi 0, %s116
      %s133 = sphi 0, %s117
      %s139 = sphi 0, %s141
      %s142 = sphi 0, %s139
      %s143 = sphi 0, %s142
      %s159 = sphi 0, %s143
    $region4: #{_preact_bottleneck_jit.4} parent=1 // loop_header_branch
      %14 = sbr.rel (%p12) target = $region8
    $region5: #{_preact_bottleneck_jit.4} parent=1 // loop_body
      %s16 = ssub.s32 %s11, 1
      %s17 = ssub.s32 %s11, 2
      %s24 = sadd.s32 1, %s19
      %p25 = scmp.ge.s32.totalorder %s24, 9
      %s26 = scalar_select %p25, 0, %s24
      %s27 = sadd.s32 1, %s18
      %s28 = scalar_select %p25, %s27, %s18
      %p29 = scmp.ge.s32.totalorder %s28, 1
      %s30 = scalar_select %p29, 0, %s28
      %s31 = ssub.s32 %s18, %s30
      %s32 = ssub.s32 %s19, %s26
      %s33 = sor.u32 %s31, %s32
      %p34 = scmp.eq.s32.totalorder %s33, 0
      %s36 = sadd.s32 %s35, 1
      %s37 = scalar_select %p34, %s35, %s36
      %p40 = pneg %p34
      %p41 = scmp.eq.s32.totalorder %s11, 8
      %p42 = por %p40, %p41
      %p43 = scmp.ne.s32.totalorder %s35, %s38
      %p44 = scmp.eq.s32.totalorder %s11, 0
      %p45 = por %p43, %p44
      %p46 = scmp.ne.s32.totalorder %s35, %s38
      %p47 = scmp.eq.s32.totalorder %s16, 8
      %p48 = por %p46, %p47
      %p49 = scmp.ne.s32.totalorder %s38, %s39
      %p50 = scmp.eq.s32.totalorder %s16, 0
      %p51 = por %p49, %p50
      %p52 = scmp.ne.s32.totalorder %s38, %s39
      %p53 = scmp.eq.s32.totalorder %s17, 8
      %p54 = por %p52, %p53
      %p56 = scmp.ne.s32.totalorder %s39, %s55
      %p57 = scmp.eq.s32.totalorder %s17, 0
      %p58 = por %p56, %p57
      %s59 = ssub.s32 %s19, %s26
      %p60 = scmp.eq.s32.totalorder %s59, 0
      %s62 = sadd.s32 %s61, 1
      %s63 = scalar_select %p60, %s61, %s62
      %p66 = pneg %p60
      %p67 = scmp.eq.s32.totalorder %s11, 8
      %p68 = por %p66, %p67
      %p69 = scmp.ne.s32.totalorder %s61, %s64
      %p70 = scmp.eq.s32.totalorder %s11, 0
      %p71 = por %p69, %p70
      %p72 = scmp.ne.s32.totalorder %s61, %s64
      %p73 = scmp.eq.s32.totalorder %s16, 8
      %p74 = por %p72, %p73
      %p75 = scmp.ne.s32.totalorder %s64, %s65
      %p76 = scmp.eq.s32.totalorder %s16, 0
      %p77 = por %p75, %p76
      %p78 = scmp.ne.s32.totalorder %s64, %s65
      %p79 = scmp.eq.s32.totalorder %s17, 8
      %p80 = por %p78, %p79
      %p82 = scmp.ne.s32.totalorder %s65, %s81
      %p83 = scmp.eq.s32.totalorder %s17, 0
      %p84 = por %p82, %p83
      %s85 = ssub.s32 %s18, %s30
      %p86 = scmp.eq.s32.totalorder %s85, 0
      %s88 = sadd.s32 %s87, 1
      %s89 = scalar_select %p86, %s87, %s88
      %p92 = pneg %p86
      %p93 = scmp.eq.s32.totalorder %s11, 8
      %p94 = por %p92, %p93
      %p95 = scmp.ne.s32.totalorder %s87, %s90
      %p96 = scmp.eq.s32.totalorder %s11, 0
      %p97 = por %p95, %p96
      %p98 = scmp.ne.s32.totalorder %s87, %s90
      %p99 = scmp.eq.s32.totalorder %s16, 8
      %p100 = por %p98, %p99
      %p101 = scmp.ne.s32.totalorder %s90, %s91
      %p102 = scmp.eq.s32.totalorder %s16, 0
      %p103 = por %p101, %p102
      %p104 = scmp.ne.s32.totalorder %s90, %s91
      %p105 = scmp.eq.s32.totalorder %s17, 8
      %p106 = por %p104, %p105
      %p108 = scmp.ne.s32.totalorder %s91, %s107
      %p109 = scmp.eq.s32.totalorder %s17, 0
      %p110 = por %p108, %p109
      %s111 = ssub.s32 %s18, %s30
      %p112 = scmp.eq.s32.totalorder %s111, 0
      %s114 = sadd.s32 %s113, 1
      %s115 = scalar_select %p112, %s113, %s114
      %p118 = pneg %p112
      %p119 = scmp.eq.s32.totalorder %s11, 8
      %p120 = por %p118, %p119
      %p121 = scmp.ne.s32.totalorder %s113, %s116
      %p122 = scmp.eq.s32.totalorder %s11, 0
      %p123 = por %p121, %p122
      %p124 = scmp.ne.s32.totalorder %s113, %s116
      %p125 = scmp.eq.s32.totalorder %s16, 8
      %p126 = por %p124, %p125
      %p127 = scmp.ne.s32.totalorder %s116, %s117
      %p128 = scmp.eq.s32.totalorder %s16, 0
      %p129 = por %p127, %p128
      %p130 = scmp.ne.s32.totalorder %s116, %s117
      %p131 = scmp.eq.s32.totalorder %s17, 8
      %p132 = por %p130, %p131
      %p134 = scmp.ne.s32.totalorder %s117, %s133
      %p135 = scmp.eq.s32.totalorder %s17, 0
      %p136 = por %p134, %p135
      %s137 = ssub.s32 %s18, %s30
      %p138 = scmp.eq.s32.totalorder %s137, 0
      %s140 = sadd.s32 %s139, 1
      %s141 = scalar_select %p138, %s139, %s140
      %p144 = pneg %p138
      %p145 = scmp.eq.s32.totalorder %s11, 8
      %p146 = por %p144, %p145
      %p147 = scmp.ne.s32.totalorder %s139, %s142
      %p148 = scmp.eq.s32.totalorder %s11, 0
      %p149 = por %p147, %p148
      %p150 = scmp.ne.s32.totalorder %s139, %s142
      %p151 = scmp.eq.s32.totalorder %s16, 8
      %p152 = por %p150, %p151
      %p153 = scmp.ne.s32.totalorder %s142, %s143
      %p154 = scmp.eq.s32.totalorder %s16, 0
      %p155 = por %p153, %p154
      %p156 = scmp.ne.s32.totalorder %s142, %s143
      %p157 = scmp.eq.s32.totalorder %s17, 8
      %p158 = por %p156, %p157
      %p160 = scmp.ne.s32.totalorder %s143, %s159
      %p161 = scmp.eq.s32.totalorder %s17, 0
      %p162 = por %p160, %p161
      %p163 = scmp.le.s32.totalorder 1, %s11
      %p164 = scmp.lt.s32.totalorder %s11, 10
      %p165 = pnand %p163, %p164
      %p166 = pneg %p165
      // Predicated region
      $region9: #{_preact_bottleneck_jit.4} parent=5 // pred_check
        _
      $region10: #{_preact_bottleneck_jit.4} parent=5 // pred_check_branch
        %168 = sbr.rel (%p165) target = $region12
      $region11: #{_preact_bottleneck_jit.4} parent=5 // pred_region
        %s169 = ssub.s32 %s11, 1
      $region12: #{_preact_bottleneck_jit.4} parent=5 // pred_fallthru
        _
      %p170 = scmp.lt.s32.totalorder %s11, 9
      // Predicated region
      $region13: #{_preact_bottleneck_jit.4} parent=5 // pred_check
        %p171 = pneg %p170
      $region14: #{_preact_bottleneck_jit.4} parent=5 // pred_check_branch
        %173 = sbr.rel (%p171) target = $region16
      $region15: #{_preact_bottleneck_jit.4} parent=5 // pred_region
        // Predicated region
        $region17: #{_preact_bottleneck_jit.4} parent=15 // pred_check
          %p174 = pneg %p45
        $region18: #{_preact_bottleneck_jit.4} parent=15 // pred_check_branch
          %176 = sbr.rel (%p174) target = $region20
        $region19: #{_preact_bottleneck_jit.4} parent=15 // pred_region
          %s177 = sand.u32 %s35, 1
          %s178 = sand.u32 %s35, 1
          %s179 = smul.addr %s178, 128
          %s180 = scalar_lea.vmem [#allocation3], %s179
          %s181 = smul.u32 16, %s18
          %s182 = smul.addr %s181, 9
          %s183 = sadd.s32 %s19, %s182
          %s184 = smul.addr %s183, 8
          %s185 = scalar_lea.vmem %s0, %s184
          // Predicated region
          $region21: #{_preact_bottleneck_jit.4} parent=19 // pred_check
            _
          $region22: #{_preact_bottleneck_jit.4} parent=19 // pred_check_branch
            %187 = sbr.rel (0) target = $region24
          $region23: #{_preact_bottleneck_jit.4} parent=19 // pred_region
            // Predicated region
            $region25: #{_preact_bottleneck_jit.4} parent=23 // pred_check
              _
            $region26: #{_preact_bottleneck_jit.4} parent=23 // pred_check_branch
              %189 = sbr.rel (0) target = $region28
            $region27: #{_preact_bottleneck_jit.4} parent=23 // pred_region
              // Predicated region
              $region40: #{_preact_bottleneck_jit.4} parent=27 // pred_check
                _
              $region41: #{_preact_bottleneck_jit.4} parent=27 // pred_check_branch
                %234 = sbr.rel (0) target = $region43
              $region42: #{_preact_bottleneck_jit.4} parent=27 // pred_region
                loop: start=0, step=1, limit=1
                $region44: #{_preact_bottleneck_jit.4} parent=42 // loop_pre_header
                  _
                $region45: #{_preact_bottleneck_jit.4} parent=42 // loop_header
                  %s236 = sphi 0, %s240
                  %p237 = scmp.ge.s32.totalorder %s236, 1
                  %s241 = sphi %s185, %s185
                  %s242 = sphi %s180, %s180
                $region46: #{_preact_bottleneck_jit.4} parent=42 // loop_header_branch
                  %239 = sbr.rel (%p237) target = $region50
                $region47: #{_preact_bottleneck_jit.4} parent=42 // loop_body
                  %v243 = vld [vmem:[%s241] sm:$0xff]
                  %244 = vst [vmem:[%s242] sm:$0xff] %v243
                  %v245 = vld [vmem:[%s241 + $0x48] sm:$0xff]
                  %246 = vst [vmem:[%s242 + $0x8] sm:$0xff] %v245
                  %v247 = vld [vmem:[%s241 + $0x90] sm:$0xff]
                  %248 = vst [vmem:[%s242 + $0x10] sm:$0xff] %v247
                  %v249 = vld [vmem:[%s241 + $0xd8] sm:$0xff]
                  %250 = vst [vmem:[%s242 + $0x18] sm:$0xff] %v249
                  %v251 = vld [vmem:[%s241 + $0x120] sm:$0xff]
                  %252 = vst [vmem:[%s242 + $0x20] sm:$0xff] %v251
                  %v253 = vld [vmem:[%s241 + $0x168] sm:$0xff]
                  %254 = vst [vmem:[%s242 + $0x28] sm:$0xff] %v253
                  %v255 = vld [vmem:[%s241 + $0x1b0] sm:$0xff]
                  %256 = vst [vmem:[%s242 + $0x30] sm:$0xff] %v255
                  %v257 = vld [vmem:[%s241 + $0x1f8] sm:$0xff]
                  %258 = vst [vmem:[%s242 + $0x38] sm:$0xff] %v257
                  %v259 = vld [vmem:[%s241 + $0x240] sm:$0xff]
                  %260 = vst [vmem:[%s242 + $0x40] sm:$0xff] %v259
                  %v261 = vld [vmem:[%s241 + $0x288] sm:$0xff]
                  %262 = vst [vmem:[%s242 + $0x48] sm:$0xff] %v261
                  %v263 = vld [vmem:[%s241 + $0x2d0] sm:$0xff]
                  %264 = vst [vmem:[%s242 + $0x50] sm:$0xff] %v263
                  %v265 = vld [vmem:[%s241 + $0x318] sm:$0xff]
                  %266 = vst [vmem:[%s242 + $0x58] sm:$0xff] %v265
                  %v267 = vld [vmem:[%s241 + $0x360] sm:$0xff]
                  %268 = vst [vmem:[%s242 + $0x60] sm:$0xff] %v267
                  %v269 = vld [vmem:[%s241 + $0x3a8] sm:$0xff]
                  %270 = vst [vmem:[%s242 + $0x68] sm:$0xff] %v269
                  %v271 = vld [vmem:[%s241 + $0x3f0] sm:$0xff]
                  %272 = vst [vmem:[%s242 + $0x70] sm:$0xff] %v271
                  %v273 = vld [vmem:[%s241 + $0x438] sm:$0xff]
                  %274 = vst [vmem:[%s242 + $0x78] sm:$0xff] %v273
                $region48: #{_preact_bottleneck_jit.4} parent=42 // loop_footer
                  %s240 = sadd.s32 1, %s236
                $region49: #{_preact_bottleneck_jit.4} parent=42 // loop_footer_branch
                  %235 = sbr.rel target = $region45
                $region50: #{_preact_bottleneck_jit.4} parent=42 // loop_exit
                  _
              $region43: #{_preact_bottleneck_jit.4} parent=27 // pred_fallthru
                _
              // Predicated region
              $region51: #{_preact_bottleneck_jit.4} parent=27 // pred_check
                _
              $region52: #{_preact_bottleneck_jit.4} parent=27 // pred_check_branch
                %276 = sbr.rel target = $region54
              $region53: #{_preact_bottleneck_jit.4} parent=27 // pred_region
                _
              $region54: #{_preact_bottleneck_jit.4} parent=27 // pred_fallthru
                _
            $region28: #{_preact_bottleneck_jit.4} parent=23 // pred_fallthru
              _
            // Predicated region
            $region29: #{_preact_bottleneck_jit.4} parent=23 // pred_check
              _
            $region30: #{_preact_bottleneck_jit.4} parent=23 // pred_check_branch
              %191 = sbr.rel target = $region32
            $region31: #{_preact_bottleneck_jit.4} parent=23 // pred_region
              loop: start=0, step=1, limit=1
              $region33: #{_preact_bottleneck_jit.4} parent=31 // loop_pre_header
                _
              $region34: #{_preact_bottleneck_jit.4} parent=31 // loop_header
                %s194 = sphi 0, %s198
                %p195 = scmp.ge.s32.totalorder %s194, 1
                %s199 = sphi %s185, %s185
                %s200 = sphi %s180, %s180
              $region35: #{_preact_bottleneck_jit.4} parent=31 // loop_header_branch
                %197 = sbr.rel (%p195) target = $region39
              $region36: #{_preact_bottleneck_jit.4} parent=31 // loop_body
                %v201 = vld [vmem:[%s199] sm:$0xff]
                %202 = vst [vmem:[%s200] sm:$0xff] %v201
                %v203 = vld [vmem:[%s199 + $0x48] sm:$0xff]
                %204 = vst [vmem:[%s200 + $0x8] sm:$0xff] %v203
                %v205 = vld [vmem:[%s199 + $0x90] sm:$0xff]
                %206 = vst [vmem:[%s200 + $0x10] sm:$0xff] %v205
                %v207 = vld [vmem:[%s199 + $0xd8] sm:$0xff]
                %208 = vst [vmem:[%s200 + $0x18] sm:$0xff] %v207
                %v209 = vld [vmem:[%s199 + $0x120] sm:$0xff]
                %210 = vst [vmem:[%s200 + $0x20] sm:$0xff] %v209
                %v211 = vld [vmem:[%s199 + $0x168] sm:$0xff]
                %212 = vst [vmem:[%s200 + $0x28] sm:$0xff] %v211
                %v213 = vld [vmem:[%s199 + $0x1b0] sm:$0xff]
                %214 = vst [vmem:[%s200 + $0x30] sm:$0xff] %v213
                %v215 = vld [vmem:[%s199 + $0x1f8] sm:$0xff]
                %216 = vst [vmem:[%s200 + $0x38] sm:$0xff] %v215
                %v217 = vld [vmem:[%s199 + $0x240] sm:$0xff]
                %218 = vst [vmem:[%s200 + $0x40] sm:$0xff] %v217
                %v219 = vld [vmem:[%s199 + $0x288] sm:$0xff]
                %220 = vst [vmem:[%s200 + $0x48] sm:$0xff] %v219
                %v221 = vld [vmem:[%s199 + $0x2d0] sm:$0xff]
                %222 = vst [vmem:[%s200 + $0x50] sm:$0xff] %v221
                %v223 = vld [vmem:[%s199 + $0x318] sm:$0xff]
                %224 = vst [vmem:[%s200 + $0x58] sm:$0xff] %v223
                %v225 = vld [vmem:[%s199 + $0x360] sm:$0xff]
                %226 = vst [vmem:[%s200 + $0x60] sm:$0xff] %v225
                %v227 = vld [vmem:[%s199 + $0x3a8] sm:$0xff]
                %228 = vst [vmem:[%s200 + $0x68] sm:$0xff] %v227
                %v229 = vld [vmem:[%s199 + $0x3f0] sm:$0xff]
                %230 = vst [vmem:[%s200 + $0x70] sm:$0xff] %v229
                %v231 = vld [vmem:[%s199 + $0x438] sm:$0xff]
                %232 = vst [vmem:[%s200 + $0x78] sm:$0xff] %v231
              $region37: #{_preact_bottleneck_jit.4} parent=31 // loop_footer
                %s198 = sadd.s32 1, %s194
              $region38: #{_preact_bottleneck_jit.4} parent=31 // loop_footer_branch
                %193 = sbr.rel target = $region34
              $region39: #{_preact_bottleneck_jit.4} parent=31 // loop_exit
                _
            $region32: #{_preact_bottleneck_jit.4} parent=23 // pred_fallthru
              _
          $region24: #{_preact_bottleneck_jit.4} parent=19 // pred_fallthru
            _
          %277 = vnop
        $region20: #{_preact_bottleneck_jit.4} parent=15 // pred_fallthru
          _
        // Predicated region
        $region55: #{_preact_bottleneck_jit.4} parent=15 // pred_check
          %p278 = pneg %p71
        $region56: #{_preact_bottleneck_jit.4} parent=15 // pred_check_branch
          %280 = sbr.rel (%p278) target = $region58
        $region57: #{_preact_bottleneck_jit.4} parent=15 // pred_region
          %s281 = smul.u32 16, %s19
          %p282 = scmp.lt.s32.totalorder %s281, 143
          %s283 = scalar_select %p282, %s281, 143
          %s284 = smul.addr %s283, 8
          %s285 = scalar_lea.vmem %s1, %s284
          %s286 = smul.u32 16, %s19
        $region58: #{_preact_bottleneck_jit.4} parent=15 // pred_fallthru
          _
      $region16: #{_preact_bottleneck_jit.4} parent=5 // pred_fallthru
        _
      %p287 = scmp.le.s32.totalorder 1, %s11
      %p288 = scmp.lt.s32.totalorder %s11, 10
      %p289 = pnand %p287, %p288
      %p290 = pneg %p289
      // Predicated region
      $region59: #{_preact_bottleneck_jit.4} parent=5 // pred_check
        _
      $region60: #{_preact_bottleneck_jit.4} parent=5 // pred_check_branch
        %292 = sbr.rel (%p289) target = $region62
      $region61: #{_preact_bottleneck_jit.4} parent=5 // pred_region
        %s293 = ssub.s32 %s11, 1
        %s294 = sand.u32 %s38, 1
        %s295 = sand.u32 %s38, 1
        %s296 = smul.addr %s295, 128
        %s297 = scalar_lea.vmem [#allocation3], %s296
        // Predicated region
        $region63: #{_preact_bottleneck_jit.4} parent=61 // pred_check
          %p298 = pneg %p51
        $region64: #{_preact_bottleneck_jit.4} parent=61 // pred_check_branch
          %300 = sbr.rel (%p298) target = $region66
        $region65: #{_preact_bottleneck_jit.4} parent=61 // pred_region
          _
        $region66: #{_preact_bottleneck_jit.4} parent=61 // pred_fallthru
          _
        %s301 = sand.u32 %s38, 1
        %s302 = sand.u32 %s38, 1
        %s303 = smul.addr %s302, 128
        %s304 = scalar_lea.vmem [#allocation3], %s303
        %p305 = pneg %p51
        %p306 = pneg %p48
        %s307 = smul.u32 16, %s21
        %p308 = scmp.lt.s32.totalorder %s307, 143
        %s309 = scalar_select %p308, %s307, 143
        %s310 = smul.addr %s309, 8
        %s311 = scalar_lea.vmem %s1, %s310
        %p312 = pneg %p77
        %p313 = pneg %p74
        %p314 = pneg %p103
        %p315 = pneg %p100
        %s316 = smul.u32 16, %s20
        %p317 = scmp.lt.s32.totalorder %s316, 15
        %s318 = scalar_select %p317, %s316, 15
        %s319 = smul.addr %s318, 8
        %s320 = scalar_lea.vmem %s2, %s319
        %p321 = pneg %p129
        %p322 = pneg %p126
        %p323 = scmp.lt.s32.totalorder %s20, 0
        %s324 = scalar_select %p323, %s20, 0
        %s325 = scalar_lea.vmem %s3, %s324
        %p326 = pneg %p155
        %p327 = pneg %p152
        %p328 = scmp.lt.s32.totalorder %s20, 0
        %s329 = scalar_select %p328, %s20, 0
        %s330 = scalar_lea.vmem %s4, %s329
        %s331 = smul.u32 16, %s20
        %s332 = smul.u32 16, %s21
        %p333 = scmp.lt.s32.totalorder %s332, 143
        %s334 = scalar_select %p333, %s332, 143
        %s335 = smul.addr %s334, 8
        %s336 = scalar_lea.vmem %s1, %s335
        %s337 = smul.u32 16, %s21
        %s338 = smul.u32 16, %s20
        %p339 = scmp.lt.s32.totalorder %s338, 15
        %s340 = scalar_select %p339, %s338, 15
        %s341 = smul.addr %s340, 8
        %s342 = scalar_lea.vmem %s2, %s341
        %s343 = smul.u32 16, %s20
        %p344 = scmp.lt.s32.totalorder %s20, 0
        %s345 = scalar_select %p344, %s20, 0
        %s346 = scalar_lea.vmem %s3, %s345
        %p347 = scmp.lt.s32.totalorder %s20, 0
        %s348 = scalar_select %p347, %s20, 0
        %s349 = scalar_lea.vmem %s4, %s348
        %p350 = scmp.eq.s32.totalorder %s21, 0
        // Predicated region
        $region67: #{_preact_bottleneck_jit.4} parent=61 // pred_check
          %p351 = pneg %p350
        $region68: #{_preact_bottleneck_jit.4} parent=61 // pred_check_branch
          %353 = sbr.rel (%p351) target = $region70
        $region69: #{_preact_bottleneck_jit.4} parent=61 // pred_region
          %354 = vst [vmem:[#allocation2] sm:$0xff] 0.0
          %355 = vst [vmem:[#allocation2 + $0x8] sm:$0xff] 0.0
          %356 = vst [vmem:[#allocation2 + $0x10] sm:$0xff] 0.0
          %357 = vst [vmem:[#allocation2 + $0x18] sm:$0xff] 0.0
          %358 = vst [vmem:[#allocation2 + $0x20] sm:$0xff] 0.0
          %359 = vst [vmem:[#allocation2 + $0x28] sm:$0xff] 0.0
          %360 = vst [vmem:[#allocation2 + $0x30] sm:$0xff] 0.0
          %361 = vst [vmem:[#allocation2 + $0x38] sm:$0xff] 0.0
          %362 = vst [vmem:[#allocation2 + $0x40] sm:$0xff] 0.0
          %363 = vst [vmem:[#allocation2 + $0x48] sm:$0xff] 0.0
          %364 = vst [vmem:[#allocation2 + $0x50] sm:$0xff] 0.0
          %365 = vst [vmem:[#allocation2 + $0x58] sm:$0xff] 0.0
          %366 = vst [vmem:[#allocation2 + $0x60] sm:$0xff] 0.0
          %367 = vst [vmem:[#allocation2 + $0x68] sm:$0xff] 0.0
          %368 = vst [vmem:[#allocation2 + $0x70] sm:$0xff] 0.0
          %369 = vst [vmem:[#allocation2 + $0x78] sm:$0xff] 0.0
        $region70: #{_preact_bottleneck_jit.4} parent=61 // pred_fallthru
          _
        %v370 = vld [vmem:[#allocation2] sm:$0xff]
        %v371 = vld [vmem:[#allocation2 + $0x8] sm:$0xff]
        %v372 = vld [vmem:[#allocation2 + $0x10] sm:$0xff]
        %v373 = vld [vmem:[#allocation2 + $0x18] sm:$0xff]
        %v374 = vld [vmem:[#allocation2 + $0x20] sm:$0xff]
        %v375 = vld [vmem:[#allocation2 + $0x28] sm:$0xff]
        %v376 = vld [vmem:[#allocation2 + $0x30] sm:$0xff]
        %v377 = vld [vmem:[#allocation2 + $0x38] sm:$0xff]
        %v378 = vld [vmem:[#allocation2 + $0x40] sm:$0xff]
        %v379 = vld [vmem:[#allocation2 + $0x48] sm:$0xff]
        %v380 = vld [vmem:[#allocation2 + $0x50] sm:$0xff]
        %v381 = vld [vmem:[#allocation2 + $0x58] sm:$0xff]
        %v382 = vld [vmem:[#allocation2 + $0x60] sm:$0xff]
        %v383 = vld [vmem:[#allocation2 + $0x68] sm:$0xff]
        %v384 = vld [vmem:[#allocation2 + $0x70] sm:$0xff]
        %v385 = vld [vmem:[#allocation2 + $0x78] sm:$0xff]
        %v386 = vld [vmem:[%s297] sm:$0xff]
        %v387 = vld [vmem:[%s297 + $0x8] sm:$0xff]
        %v388 = vld [vmem:[%s297 + $0x10] sm:$0xff]
        %v389 = vld [vmem:[%s297 + $0x18] sm:$0xff]
        %v390 = vld [vmem:[%s297 + $0x20] sm:$0xff]
        %v391 = vld [vmem:[%s297 + $0x28] sm:$0xff]
        %v392 = vld [vmem:[%s297 + $0x30] sm:$0xff]
        %v393 = vld [vmem:[%s297 + $0x38] sm:$0xff]
        %v394 = vld [vmem:[%s297 + $0x40] sm:$0xff]
        %v395 = vld [vmem:[%s297 + $0x48] sm:$0xff]
        %v396 = vld [vmem:[%s297 + $0x50] sm:$0xff]
        %v397 = vld [vmem:[%s297 + $0x58] sm:$0xff]
        %v398 = vld [vmem:[%s297 + $0x60] sm:$0xff]
        %v399 = vld [vmem:[%s297 + $0x68] sm:$0xff]
        %v400 = vld [vmem:[%s297 + $0x70] sm:$0xff]
        %v401 = vld [vmem:[%s297 + $0x78] sm:$0xff]
        %v402 = vld [vmem:[%s336] sm:$0xff]
        %v403 = vld [vmem:[%s336 + $0x8] sm:$0xff]
        %v404 = vld [vmem:[%s336 + $0x10] sm:$0xff]
        %v405 = vld [vmem:[%s336 + $0x18] sm:$0xff]
        %v406 = vld [vmem:[%s336 + $0x20] sm:$0xff]
        %v407 = vld [vmem:[%s336 + $0x28] sm:$0xff]
        %v408 = vld [vmem:[%s336 + $0x30] sm:$0xff]
        %v409 = vld [vmem:[%s336 + $0x38] sm:$0xff]
        %v410 = vld [vmem:[%s336 + $0x40] sm:$0xff]
        %v411 = vld [vmem:[%s336 + $0x48] sm:$0xff]
        %v412 = vld [vmem:[%s336 + $0x50] sm:$0xff]
        %v413 = vld [vmem:[%s336 + $0x58] sm:$0xff]
        %v414 = vld [vmem:[%s336 + $0x60] sm:$0xff]
        %v415 = vld [vmem:[%s336 + $0x68] sm:$0xff]
        %v416 = vld [vmem:[%s336 + $0x70] sm:$0xff]
        %v417 = vld [vmem:[%s336 + $0x78] sm:$0xff]
        %418 = vmatprep.subr.mxu0 0.0
        %419 = vmatpush1.msra.mxu0 %v402
        %420 = vmatprep.subr.mxu0 0.0
        %421 = vmatpush1.msra.mxu0 %v403
        %422 = vmatprep.subr.mxu0 0.0
        %423 = vmatpush1.msra.mxu0 %v404
        %424 = vmatprep.subr.mxu0 0.0
        %425 = vmatpush1.msra.mxu0 %v405
        %426 = vmatprep.subr.mxu0 0.0
        %427 = vmatpush1.msra.mxu0 %v406
        %428 = vmatprep.subr.mxu0 0.0
        %429 = vmatpush1.msra.mxu0 %v407
        %430 = vmatprep.subr.mxu0 0.0
        %431 = vmatpush1.msra.mxu0 %v408
        %432 = vmatprep.subr.mxu0 0.0
        %433 = vmatpush1.msra.mxu0 %v409
        %434 = vmatprep.subr.mxu0 0.0
        %435 = vmatpush1.msra.mxu0 %v410
        %436 = vmatprep.subr.mxu0 0.0
        %437 = vmatpush1.msra.mxu0 %v411
        %438 = vmatprep.subr.mxu0 0.0
        %439 = vmatpush1.msra.mxu0 %v412
        %440 = vmatprep.subr.mxu0 0.0
        %441 = vmatpush1.msra.mxu0 %v413
        %442 = vmatprep.subr.mxu0 0.0
        %443 = vmatpush1.msra.mxu0 %v414
        %444 = vmatprep.subr.mxu0 0.0
        %445 = vmatpush1.msra.mxu0 %v415
        %446 = vmatprep.subr.mxu0 0.0
        %447 = vmatpush1.msra.mxu0 %v416
        %448 = vmatprep.subr.mxu0 0.0
        %449 = vmatpush1.msra.mxu0 %v417
        %450 = vmatprep.subr.mxu0 0.0
        %451 = vmatpush1.msra.mxu0 0.0
        %452 = vmatprep.subr.mxu0 0.0
        %453 = vmatpush1.msra.mxu0 0.0
        %454 = vmatprep.subr.mxu0 0.0
        %455 = vmatpush1.msra.mxu0 0.0
        %456 = vmatprep.subr.mxu0 0.0
        %457 = vmatpush1.msra.mxu0 0.0
        %458 = vmatprep.subr.mxu0 0.0
        %459 = vmatpush1.msra.mxu0 0.0
        %460 = vmatprep.subr.mxu0 0.0
        %461 = vmatpush1.msra.mxu0 0.0
        %462 = vmatprep.subr.mxu0 0.0
        %463 = vmatpush1.msra.mxu0 0.0
        %464 = vmatprep.subr.mxu0 0.0
        %465 = vmatpush1.msra.mxu0 0.0
        %466 = vmatprep.subr.mxu0 0.0
        %467 = vmatpush1.msra.mxu0 0.0
        %468 = vmatprep.subr.mxu0 0.0
        %469 = vmatpush1.msra.mxu0 0.0
        %470 = vmatprep.subr.mxu0 0.0
        %471 = vmatpush1.msra.mxu0 0.0
        %472 = vmatprep.subr.mxu0 0.0
        %473 = vmatpush1.msra.mxu0 0.0
        %474 = vmatprep.subr.mxu0 0.0
        %475 = vmatpush1.msra.mxu0 0.0
        %476 = vmatprep.subr.mxu0 0.0
        %477 = vmatpush1.msra.mxu0 0.0
        %478 = vmatprep.subr.mxu0 0.0
        %479 = vmatpush1.msra.mxu0 0.0
        %480 = vmatprep.subr.mxu0 0.0
        %481 = vmatpush1.msra.mxu0 0.0
        %482 = vmatprep.mubr.f32.mxu0 0.0
        %483 = vmatmul.mubr.f32.gmra.mrb[0].mxu0 %v386
        %v484 = vpop.f32.mrb[0].mxu0
        %v485 = vadd.f32 0.0, %v484
        %v486 = vpop.f32.mrb[0].mxu0
        %487 = vmatprep.mubr.f32.mxu0 0.0
        %488 = vmatmul.mubr.f32.gmra.mrb[0].mxu0 %v387
        %v489 = vpop.f32.mrb[0].mxu0
        %v490 = vadd.f32 0.0, %v489
        %v491 = vpop.f32.mrb[0].mxu0
        %492 = vmatprep.mubr.f32.mxu0 0.0
        %493 = vmatmul.mubr.f32.gmra.mrb[0].mxu0 %v388
        %v494 = vpop.f32.mrb[0].mxu0
        %v495 = vadd.f32 0.0, %v494
        %v496 = vpop.f32.mrb[0].mxu0
        %497 = vmatprep.mubr.f32.mxu0 0.0
        %498 = vmatmul.mubr.f32.gmra.mrb[0].mxu0 %v389
        %v499 = vpop.f32.mrb[0].mxu0
        %v500 = vadd.f32 0.0, %v499
        %v501 = vpop.f32.mrb[0].mxu0
        %502 = vmatprep.mubr.f32.mxu0 0.0
        %503 = vmatmul.mubr.f32.gmra.mrb[0].mxu0 %v390
        %v504 = vpop.f32.mrb[0].mxu0
        %v505 = vadd.f32 0.0, %v504
        %v506 = vpop.f32.mrb[0].mxu0
        %507 = vmatprep.mubr.f32.mxu0 0.0
        %508 = vmatmul.mubr.f32.gmra.mrb[0].mxu0 %v391
        %v509 = vpop.f32.mrb[0].mxu0
        %v510 = vadd.f32 0.0, %v509
        %v511 = vpop.f32.mrb[0].mxu0
        %512 = vmatprep.mubr.f32.mxu0 0.0
        %513 = vmatmul.mubr.f32.gmra.mrb[0].mxu0 %v392
        %v514 = vpop.f32.mrb[0].mxu0
        %v515 = vadd.f32 0.0, %v514
        %v516 = vpop.f32.mrb[0].mxu0
        %517 = vmatprep.mubr.f32.mxu0 0.0
        %518 = vmatmul.mubr.f32.gmra.mrb[0].mxu0 %v393
        %v519 = vpop.f32.mrb[0].mxu0
        %v520 = vadd.f32 0.0, %v519
        %v521 = vpop.f32.mrb[0].mxu0
        %522 = vmatprep.mubr.f32.mxu0 0.0
        %523 = vmatmul.mubr.f32.gmra.mrb[0].mxu0 %v394
        %v524 = vpop.f32.mrb[0].mxu0
        %v525 = vadd.f32 0.0, %v524
        %v526 = vpop.f32.mrb[0].mxu0
        %527 = vmatprep.mubr.f32.mxu0 0.0
        %528 = vmatmul.mubr.f32.gmra.mrb[0].mxu0 %v395
        %v529 = vpop.f32.mrb[0].mxu0
        %v530 = vadd.f32 0.0, %v529
        %v531 = vpop.f32.mrb[0].mxu0
        %532 = vmatprep.mubr.f32.mxu0 0.0
        %533 = vmatmul.mubr.f32.gmra.mrb[0].mxu0 %v396
        %v534 = vpop.f32.mrb[0].mxu0
        %v535 = vadd.f32 0.0, %v534
        %v536 = vpop.f32.mrb[0].mxu0
        %537 = vmatprep.mubr.f32.mxu0 0.0
        %538 = vmatmul.mubr.f32.gmra.mrb[0].mxu0 %v397
        %v539 = vpop.f32.mrb[0].mxu0
        %v540 = vadd.f32 0.0, %v539
        %v541 = vpop.f32.mrb[0].mxu0
        %542 = vmatprep.mubr.f32.mxu0 0.0
        %543 = vmatmul.mubr.f32.gmra.mrb[0].mxu0 %v398
        %v544 = vpop.f32.mrb[0].mxu0
        %v545 = vadd.f32 0.0, %v544
        %v546 = vpop.f32.mrb[0].mxu0
        %547 = vmatprep.mubr.f32.mxu0 0.0
        %548 = vmatmul.mubr.f32.gmra.mrb[0].mxu0 %v399
        %v549 = vpop.f32.mrb[0].mxu0
        %v550 = vadd.f32 0.0, %v549
        %v551 = vpop.f32.mrb[0].mxu0
        %552 = vmatprep.mubr.f32.mxu0 0.0
        %553 = vmatmul.mubr.f32.gmra.mrb[0].mxu0 %v400
        %v554 = vpop.f32.mrb[0].mxu0
        %v555 = vadd.f32 0.0, %v554
        %v556 = vpop.f32.mrb[0].mxu0
        %557 = vmatprep.mubr.f32.mxu0 0.0
        %558 = vmatmul.mubr.f32.gmra.mrb[0].mxu0 %v401
        %v559 = vpop.f32.mrb[0].mxu0
        %v560 = vadd.f32 0.0, %v559
        %v561 = vpop.f32.mrb[0].mxu0
        %562 = vdwg.mxu0
        %v563 = vadd.f32 %v370, %v485
        %v564 = vadd.f32 %v371, %v490
        %v565 = vadd.f32 %v372, %v495
        %v566 = vadd.f32 %v373, %v500
        %v567 = vadd.f32 %v374, %v505
        %v568 = vadd.f32 %v375, %v510
        %v569 = vadd.f32 %v376, %v515
        %v570 = vadd.f32 %v377, %v520
        %v571 = vadd.f32 %v378, %v525
        %v572 = vadd.f32 %v379, %v530
        %v573 = vadd.f32 %v380, %v535
        %v574 = vadd.f32 %v381, %v540
        %v575 = vadd.f32 %v382, %v545
        %v576 = vadd.f32 %v383, %v550
        %v577 = vadd.f32 %v384, %v555
        %v578 = vadd.f32 %v385, %v560
        %579 = vst [vmem:[#allocation2] sm:$0xff] %v563
        %580 = vst [vmem:[#allocation2 + $0x8] sm:$0xff] %v564
        %581 = vst [vmem:[#allocation2 + $0x10] sm:$0xff] %v565
        %582 = vst [vmem:[#allocation2 + $0x18] sm:$0xff] %v566
        %583 = vst [vmem:[#allocation2 + $0x20] sm:$0xff] %v567
        %584 = vst [vmem:[#allocation2 + $0x28] sm:$0xff] %v568
        %585 = vst [vmem:[#allocation2 + $0x30] sm:$0xff] %v569
        %586 = vst [vmem:[#allocation2 + $0x38] sm:$0xff] %v570
        %587 = vst [vmem:[#allocation2 + $0x40] sm:$0xff] %v571
        %588 = vst [vmem:[#allocation2 + $0x48] sm:$0xff] %v572
        %589 = vst [vmem:[#allocation2 + $0x50] sm:$0xff] %v573
        %590 = vst [vmem:[#allocation2 + $0x58] sm:$0xff] %v574
        %591 = vst [vmem:[#allocation2 + $0x60] sm:$0xff] %v575
        %592 = vst [vmem:[#allocation2 + $0x68] sm:$0xff] %v576
        %593 = vst [vmem:[#allocation2 + $0x70] sm:$0xff] %v577
        %594 = vst [vmem:[#allocation2 + $0x78] sm:$0xff] %v578
        %p595 = scmp.eq.s32.totalorder %s21, 8
        // Predicated region
        $region71: #{_preact_bottleneck_jit.4} parent=61 // pred_check
          %p596 = pneg %p595
        $region72: #{_preact_bottleneck_jit.4} parent=61 // pred_check_branch
          %598 = sbr.rel (%p596) target = $region74
        $region73: #{_preact_bottleneck_jit.4} parent=61 // pred_region
          %v599 = vld [vmem:[#allocation2] sm:$0xff]
          %v600 = vld [vmem:[#allocation2 + $0x8] sm:$0xff]
          %v601 = vld [vmem:[#allocation2 + $0x10] sm:$0xff]
          %v602 = vld [vmem:[#allocation2 + $0x18] sm:$0xff]
          %v603 = vld [vmem:[#allocation2 + $0x20] sm:$0xff]
          %v604 = vld [vmem:[#allocation2 + $0x28] sm:$0xff]
          %v605 = vld [vmem:[#allocation2 + $0x30] sm:$0xff]
          %v606 = vld [vmem:[#allocation2 + $0x38] sm:$0xff]
          %v607 = vld [vmem:[#allocation2 + $0x40] sm:$0xff]
          %v608 = vld [vmem:[#allocation2 + $0x48] sm:$0xff]
          %v609 = vld [vmem:[#allocation2 + $0x50] sm:$0xff]
          %v610 = vld [vmem:[#allocation2 + $0x58] sm:$0xff]
          %v611 = vld [vmem:[#allocation2 + $0x60] sm:$0xff]
          %v612 = vld [vmem:[#allocation2 + $0x68] sm:$0xff]
          %v613 = vld [vmem:[#allocation2 + $0x70] sm:$0xff]
          %v614 = vld [vmem:[#allocation2 + $0x78] sm:$0xff]
          %615 = vst [vmem:[%s342] sm:$0xff] %v599
          %616 = vst [vmem:[%s342 + $0x8] sm:$0xff] %v600
          %617 = vst [vmem:[%s342 + $0x10] sm:$0xff] %v601
          %618 = vst [vmem:[%s342 + $0x18] sm:$0xff] %v602
          %619 = vst [vmem:[%s342 + $0x20] sm:$0xff] %v603
          %620 = vst [vmem:[%s342 + $0x28] sm:$0xff] %v604
          %621 = vst [vmem:[%s342 + $0x30] sm:$0xff] %v605
          %622 = vst [vmem:[%s342 + $0x38] sm:$0xff] %v606
          %623 = vst [vmem:[%s342 + $0x40] sm:$0xff] %v607
          %624 = vst [vmem:[%s342 + $0x48] sm:$0xff] %v608
          %625 = vst [vmem:[%s342 + $0x50] sm:$0xff] %v609
          %626 = vst [vmem:[%s342 + $0x58] sm:$0xff] %v610
          %627 = vst [vmem:[%s342 + $0x60] sm:$0xff] %v611
          %628 = vst [vmem:[%s342 + $0x68] sm:$0xff] %v612
          %629 = vst [vmem:[%s342 + $0x70] sm:$0xff] %v613
          %630 = vst [vmem:[%s342 + $0x78] sm:$0xff] %v614
          %v631 = vadd.f32 %v599, %v600
          %v632 = vadd.f32 %v631, %v601
          %v633 = vadd.f32 %v632, %v602
          %v634 = vadd.f32 %v633, %v603
          %v635 = vadd.f32 %v634, %v604
          %v636 = vadd.f32 %v635, %v605
          %v637 = vadd.f32 %v636, %v606
          %v638 = vadd.f32 %v637, %v607
          %v639 = vadd.f32 %v638, %v608
          %v640 = vadd.f32 %v639, %v609
          %v641 = vadd.f32 %v640, %v610
          %v642 = vadd.f32 %v641, %v611
          %v643 = vadd.f32 %v642, %v612
          %v644 = vadd.f32 %v643, %v613
          %v645 = vadd.f32 %v644, %v614
          %v646 = vrot.slane %v645, 4
          %v647 = vadd.f32 %v645, %v646
          %v648 = vrot.slane %v647, 2
          %v649 = vadd.f32 %v647, %v648
          %v650 = vrot.slane %v649, 1
          %v651 = vadd.f32 %v649, %v650
          %652 = vst [vmem:[%s346] sm:$0x1] %v651
          %v653 = vmul.f32 %v599, %v599
          %v654 = vmul.f32 %v600, %v600
          %v655 = vmul.f32 %v601, %v601
          %v656 = vmul.f32 %v602, %v602
          %v657 = vmul.f32 %v603, %v603
          %v658 = vmul.f32 %v604, %v604
          %v659 = vmul.f32 %v605, %v605
          %v660 = vmul.f32 %v606, %v606
          %v661 = vmul.f32 %v607, %v607
          %v662 = vmul.f32 %v608, %v608
          %v663 = vmul.f32 %v609, %v609
          %v664 = vmul.f32 %v610, %v610
          %v665 = vmul.f32 %v611, %v611
          %v666 = vmul.f32 %v612, %v612
          %v667 = vmul.f32 %v613, %v613
          %v668 = vmul.f32 %v614, %v614
          %v669 = vadd.f32 %v653, %v654
          %v670 = vadd.f32 %v669, %v655
          %v671 = vadd.f32 %v670, %v656
          %v672 = vadd.f32 %v671, %v657
          %v673 = vadd.f32 %v672, %v658
          %v674 = vadd.f32 %v673, %v659
          %v675 = vadd.f32 %v674, %v660
          %v676 = vadd.f32 %v675, %v661
          %v677 = vadd.f32 %v676, %v662
          %v678 = vadd.f32 %v677, %v663
          %v679 = vadd.f32 %v678, %v664
          %v680 = vadd.f32 %v679, %v665
          %v681 = vadd.f32 %v680, %v666
          %v682 = vadd.f32 %v681, %v667
          %v683 = vadd.f32 %v682, %v668
          %v684 = vrot.slane %v683, 4
          %v685 = vadd.f32 %v683, %v684
          %v686 = vrot.slane %v685, 2
          %v687 = vadd.f32 %v685, %v686
          %v688 = vrot.slane %v687, 1
          %v689 = vadd.f32 %v687, %v688
          %690 = vst [vmem:[%s349] sm:$0x1] %v689
        $region74: #{_preact_bottleneck_jit.4} parent=61 // pred_fallthru
          _
        %s691 = smul.u32 16, %s20
        %p692 = scmp.lt.s32.totalorder %s691, 15
        %s693 = scalar_select %p692, %s691, 15
        %s694 = smul.addr %s693, 8
        %s695 = scalar_lea.vmem %s2, %s694
        %p696 = scmp.lt.s32.totalorder %s20, 0
        %s697 = scalar_select %p696, %s20, 0
        %s698 = scalar_lea.vmem %s3, %s697
        %p699 = scmp.lt.s32.totalorder %s20, 0
        %s700 = scalar_select %p699, %s20, 0
        %s701 = scalar_lea.vmem %s4, %s700
        // Predicated region
        $region75: #{_preact_bottleneck_jit.4} parent=61 // pred_check
          %p702 = pneg %p100
        $region76: #{_preact_bottleneck_jit.4} parent=61 // pred_check_branch
          %704 = sbr.rel (%p702) target = $region78
        $region77: #{_preact_bottleneck_jit.4} parent=61 // pred_region
          %s705 = smul.u32 16, %s20
        $region78: #{_preact_bottleneck_jit.4} parent=61 // pred_fallthru
          _
        // Predicated region
        $region79: #{_preact_bottleneck_jit.4} parent=61 // pred_check
          %p706 = pneg %p126
        $region80: #{_preact_bottleneck_jit.4} parent=61 // pred_check_branch
          %708 = sbr.rel (%p706) target = $region82
        $region81: #{_preact_bottleneck_jit.4} parent=61 // pred_region
          _
        $region82: #{_preact_bottleneck_jit.4} parent=61 // pred_fallthru
          _
        // Predicated region
        $region83: #{_preact_bottleneck_jit.4} parent=61 // pred_check
          %p709 = pneg %p152
        $region84: #{_preact_bottleneck_jit.4} parent=61 // pred_check_branch
          %711 = sbr.rel (%p709) target = $region86
        $region85: #{_preact_bottleneck_jit.4} parent=61 // pred_region
          _
        $region86: #{_preact_bottleneck_jit.4} parent=61 // pred_fallthru
          _
        // Predicated region
        $region87: #{_preact_bottleneck_jit.4} parent=61 // pred_check
          %p712 = pneg %p100
        $region88: #{_preact_bottleneck_jit.4} parent=61 // pred_check_branch
          %714 = sbr.rel (%p712) target = $region90
        $region89: #{_preact_bottleneck_jit.4} parent=61 // pred_region
          %s715 = smul.u32 16, %s20
          %p716 = scmp.lt.s32.totalorder %s715, 15
          %s717 = scalar_select %p716, %s715, 15
          %s718 = smul.addr %s717, 8
          %s719 = scalar_lea.vmem %s2, %s718
        $region90: #{_preact_bottleneck_jit.4} parent=61 // pred_fallthru
          _
        // Predicated region
        $region91: #{_preact_bottleneck_jit.4} parent=61 // pred_check
          %p720 = pneg %p126
        $region92: #{_preact_bottleneck_jit.4} parent=61 // pred_check_branch
          %722 = sbr.rel (%p720) target = $region94
        $region93: #{_preact_bottleneck_jit.4} parent=61 // pred_region
          %p723 = scmp.lt.s32.totalorder %s20, 0
          %s724 = scalar_select %p723, %s20, 0
          %s725 = scalar_lea.vmem %s3, %s724
        $region94: #{_preact_bottleneck_jit.4} parent=61 // pred_fallthru
          _
        // Predicated region
        $region95: #{_preact_bottleneck_jit.4} parent=61 // pred_check
          %p726 = pneg %p152
        $region96: #{_preact_bottleneck_jit.4} parent=61 // pred_check_branch
          %728 = sbr.rel (%p726) target = $region98
        $region97: #{_preact_bottleneck_jit.4} parent=61 // pred_region
          %p729 = scmp.lt.s32.totalorder %s20, 0
          %s730 = scalar_select %p729, %s20, 0
          %s731 = scalar_lea.vmem %s4, %s730
        $region98: #{_preact_bottleneck_jit.4} parent=61 // pred_fallthru
          _
      $region62: #{_preact_bottleneck_jit.4} parent=5 // pred_fallthru
        _
      %p732 = scmp.le.s32.totalorder 2, %s11
      // Predicated region
      $region99: #{_preact_bottleneck_jit.4} parent=5 // pred_check
        %p733 = pneg %p732
      $region100: #{_preact_bottleneck_jit.4} parent=5 // pred_check_branch
        %735 = sbr.rel (%p733) target = $region102
      $region101: #{_preact_bottleneck_jit.4} parent=5 // pred_region
        %s736 = ssub.s32 %s11, 2
      $region102: #{_preact_bottleneck_jit.4} parent=5 // pred_fallthru
        _
    $region6: #{_preact_bottleneck_jit.4} parent=1 // loop_footer
      %s15 = sadd.s32 1, %s11
    $region7: #{_preact_bottleneck_jit.4} parent=1 // loop_footer_branch
      %10 = sbr.rel target = $region3
    $region8: #{_preact_bottleneck_jit.4} parent=1 // loop_exit
      _

// kernel: _preact_bottleneck_jit.5
$region0: #{_preact_bottleneck_jit.5}
  #allocation0 [shape = 'u32[]', space=smem, size = 0x4, offset = 0x4, fixed_abs, tag = 'smem constant byte address 0x4 - core index']
  #allocation1 [shape = 'u32[144,128]{1,0:T(1,128)}', space=vmem, size = 0x12000, scoped, tag = 'internal scratch']
  %s0 = inlined_call_operand.vmem [shape: f32[128,128], index: 0, kind: input, shape index: {}]
  %s1 = inlined_call_operand.vmem [shape: f32[1,128], index: 1, kind: input, shape index: {}]
  %s2 = inlined_call_operand.vmem [shape: f32[1,128], index: 2, kind: input, shape index: {}]
  %s3 = inlined_call_operand.vmem [shape: f32[128,128], index: 3, kind: input, shape index: {}]
  %s4 = inlined_call_operand.vmem [shape: f32[128,128], index: 4, kind: input, shape index: {}]
  %s5 = inlined_call_operand.vmem [shape: f32[1,128], index: 5, kind: input, shape index: {}]
  %s6 = inlined_call_operand.vmem [shape: f32[1,128], index: 6, kind: input, shape index: {}]
  %s7 = inlined_call_operand.vmem [shape: f32[128,128], index: 7, kind: input, shape index: {}]
  %s8 = inlined_call_operand.hbm [shape: f32[128,128], index: 8, kind: output, shape index: {}]
  %s9 = sld [smem:[#allocation0]]
  $region42: #{_preact_bottleneck_jit.5} parent=0
    _
  %s11 = ssub.s32 1, %s9
  %s12 = scalar_select 0, %s11, %s9
  $region1: #{_preact_bottleneck_jit.5} parent=0
    #allocation2 [shape = 'u8[65536]{0}', space=vmem, size = 0x10000, scoped, tag = 'output window, operand 0, single buffered']
    #allocation3 [shape = 's32[1]{0}', space=sflag, size = 0x4, scoped, tag = 'scoped memory for _preact_bottleneck_jit.5']
    %13 = vsyncpa [#allocation3], 0
    // Predicated region
    $region2: #{_preact_bottleneck_jit.5} parent=1 // pred_check
      _
    $region3: #{_preact_bottleneck_jit.5} parent=1 // pred_check_branch
      %15 = sbr.rel (0) target = $region5
    $region4: #{_preact_bottleneck_jit.5} parent=1 // pred_region
      _
    $region5: #{_preact_bottleneck_jit.5} parent=1 // pred_fallthru
      _
    // Predicated region
    $region6: #{_preact_bottleneck_jit.5} parent=1 // pred_check
      _
    $region7: #{_preact_bottleneck_jit.5} parent=1 // pred_check_branch
      %17 = sbr.rel (0) target = $region9
    $region8: #{_preact_bottleneck_jit.5} parent=1 // pred_region
      _
    $region9: #{_preact_bottleneck_jit.5} parent=1 // pred_fallthru
      _
    // Predicated region
    $region10: #{_preact_bottleneck_jit.5} parent=1 // pred_check
      _
    $region11: #{_preact_bottleneck_jit.5} parent=1 // pred_check_branch
      %19 = sbr.rel (0) target = $region13
    $region12: #{_preact_bottleneck_jit.5} parent=1 // pred_region
      _
    $region13: #{_preact_bottleneck_jit.5} parent=1 // pred_fallthru
      _
    // Predicated region
    $region14: #{_preact_bottleneck_jit.5} parent=1 // pred_check
      _
    $region15: #{_preact_bottleneck_jit.5} parent=1 // pred_check_branch
      %21 = sbr.rel (0) target = $region17
    $region16: #{_preact_bottleneck_jit.5} parent=1 // pred_region
      _
    $region17: #{_preact_bottleneck_jit.5} parent=1 // pred_fallthru
      _
    // Predicated region
    $region18: #{_preact_bottleneck_jit.5} parent=1 // pred_check
      _
    $region19: #{_preact_bottleneck_jit.5} parent=1 // pred_check_branch
      %23 = sbr.rel (0) target = $region21
    $region20: #{_preact_bottleneck_jit.5} parent=1 // pred_region
      _
    $region21: #{_preact_bottleneck_jit.5} parent=1 // pred_fallthru
      _
    // Predicated region
    $region22: #{_preact_bottleneck_jit.5} parent=1 // pred_check
      _
    $region23: #{_preact_bottleneck_jit.5} parent=1 // pred_check_branch
      %25 = sbr.rel (0) target = $region25
    $region24: #{_preact_bottleneck_jit.5} parent=1 // pred_region
      _
    $region25: #{_preact_bottleneck_jit.5} parent=1 // pred_fallthru
      _
    // Predicated region
    $region26: #{_preact_bottleneck_jit.5} parent=1 // pred_check
      _
    $region27: #{_preact_bottleneck_jit.5} parent=1 // pred_check_branch
      %27 = sbr.rel (0) target = $region29
    $region28: #{_preact_bottleneck_jit.5} parent=1 // pred_region
      _
    $region29: #{_preact_bottleneck_jit.5} parent=1 // pred_fallthru
      _
    // Predicated region
    $region30: #{_preact_bottleneck_jit.5} parent=1 // pred_check
      _
    $region31: #{_preact_bottleneck_jit.5} parent=1 // pred_check_branch
      %29 = sbr.rel (0) target = $region33
    $region32: #{_preact_bottleneck_jit.5} parent=1 // pred_region
      _
    $region33: #{_preact_bottleneck_jit.5} parent=1 // pred_fallthru
      _
    %v30 = vld [vmem:[%s0] sm:$0xff]
    %v31 = vld [vmem:[%s0 + $0x8] sm:$0xff]
    %v32 = vld [vmem:[%s0 + $0x10] sm:$0xff]
    %v33 = vld [vmem:[%s0 + $0x18] sm:$0xff]
    %v34 = vld [vmem:[%s0 + $0x20] sm:$0xff]
    %v35 = vld [vmem:[%s0 + $0x28] sm:$0xff]
    %v36 = vld [vmem:[%s0 + $0x30] sm:$0xff]
    %v37 = vld [vmem:[%s0 + $0x38] sm:$0xff]
    %v38 = vld [vmem:[%s0 + $0x40] sm:$0xff]
    %v39 = vld [vmem:[%s0 + $0x48] sm:$0xff]
    %v40 = vld [vmem:[%s0 + $0x50] sm:$0xff]
    %v41 = vld [vmem:[%s0 + $0x58] sm:$0xff]
    %v42 = vld [vmem:[%s0 + $0x60] sm:$0xff]
    %v43 = vld [vmem:[%s0 + $0x68] sm:$0xff]
    %v44 = vld [vmem:[%s0 + $0x70] sm:$0xff]
    %v45 = vld [vmem:[%s0 + $0x78] sm:$0xff]
    %v46 = vld [vmem:[%s1] sm:$0x1]
    %v48 = vlaneseq
    %v49 = vshrl.u32 %v48, 7
    %v50 = vsub.s32 0, %v49
    %v51 = vrot.slane %v46, %v50
    %v53 = vmul.f32 %v30, %v51
    %v54 = vmul.f32 %v31, %v51
    %v55 = vmul.f32 %v32, %v51
    %v56 = vmul.f32 %v33, %v51
    %v57 = vmul.f32 %v34, %v51
    %v58 = vmul.f32 %v35, %v51
    %v59 = vmul.f32 %v36, %v51
    %v60 = vmul.f32 %v37, %v51
    %v61 = vmul.f32 %v38, %v51
    %v62 = vmul.f32 %v39, %v51
    %v63 = vmul.f32 %v40, %v51
    %v64 = vmul.f32 %v41, %v51
    %v65 = vmul.f32 %v42, %v51
    %v66 = vmul.f32 %v43, %v51
    %v67 = vmul.f32 %v44, %v51
    %v68 = vmul.f32 %v45, %v51
    %v69 = vld [vmem:[%s2] sm:$0x1]
    %v71 = vlaneseq
    %v72 = vshrl.u32 %v71, 7
    %v73 = vsub.s32 0, %v72
    %v74 = vrot.slane %v69, %v73
    %v76 = vadd.f32 %v53, %v74
    %v77 = vadd.f32 %v54, %v74
    %v78 = vadd.f32 %v55, %v74
    %v79 = vadd.f32 %v56, %v74
    %v80 = vadd.f32 %v57, %v74
    %v81 = vadd.f32 %v58, %v74
    %v82 = vadd.f32 %v59, %v74
    %v83 = vadd.f32 %v60, %v74
    %v84 = vadd.f32 %v61, %v74
    %v85 = vadd.f32 %v62, %v74
    %v86 = vadd.f32 %v63, %v74
    %v87 = vadd.f32 %v64, %v74
    %v88 = vadd.f32 %v65, %v74
    %v89 = vadd.f32 %v66, %v74
    %v90 = vadd.f32 %v67, %v74
    %v91 = vadd.f32 %v68, %v74
    %v92 = vmax.f32 %v76, 0.0
    %v93 = vmax.f32 %v77, 0.0
    %v94 = vmax.f32 %v78, 0.0
    %v95 = vmax.f32 %v79, 0.0
    %v96 = vmax.f32 %v80, 0.0
    %v97 = vmax.f32 %v81, 0.0
    %v98 = vmax.f32 %v82, 0.0
    %v99 = vmax.f32 %v83, 0.0
    %v100 = vmax.f32 %v84, 0.0
    %v101 = vmax.f32 %v85, 0.0
    %v102 = vmax.f32 %v86, 0.0
    %v103 = vmax.f32 %v87, 0.0
    %v104 = vmax.f32 %v88, 0.0
    %v105 = vmax.f32 %v89, 0.0
    %v106 = vmax.f32 %v90, 0.0
    %v107 = vmax.f32 %v91, 0.0
    %v108 = vld [vmem:[%s3] sm:$0xff]
    %v109 = vld [vmem:[%s3 + $0x8] sm:$0xff]
    %v110 = vld [vmem:[%s3 + $0x10] sm:$0xff]
    %v111 = vld [vmem:[%s3 + $0x18] sm:$0xff]
    %v112 = vld [vmem:[%s3 + $0x20] sm:$0xff]
    %v113 = vld [vmem:[%s3 + $0x28] sm:$0xff]
    %v114 = vld [vmem:[%s3 + $0x30] sm:$0xff]
    %v115 = vld [vmem:[%s3 + $0x38] sm:$0xff]
    %v116 = vld [vmem:[%s3 + $0x40] sm:$0xff]
    %v117 = vld [vmem:[%s3 + $0x48] sm:$0xff]
    %v118 = vld [vmem:[%s3 + $0x50] sm:$0xff]
    %v119 = vld [vmem:[%s3 + $0x58] sm:$0xff]
    %v120 = vld [vmem:[%s3 + $0x60] sm:$0xff]
    %v121 = vld [vmem:[%s3 + $0x68] sm:$0xff]
    %v122 = vld [vmem:[%s3 + $0x70] sm:$0xff]
    %v123 = vld [vmem:[%s3 + $0x78] sm:$0xff]
    %v124 = vld [vmem:[%s4] sm:$0xff]
    %v125 = vld [vmem:[%s4 + $0x8] sm:$0xff]
    %v126 = vld [vmem:[%s4 + $0x10] sm:$0xff]
    %v127 = vld [vmem:[%s4 + $0x18] sm:$0xff]
    %v128 = vld [vmem:[%s4 + $0x20] sm:$0xff]
    %v129 = vld [vmem:[%s4 + $0x28] sm:$0xff]
    %v130 = vld [vmem:[%s4 + $0x30] sm:$0xff]
    %v131 = vld [vmem:[%s4 + $0x38] sm:$0xff]
    %v132 = vld [vmem:[%s4 + $0x40] sm:$0xff]
    %v133 = vld [vmem:[%s4 + $0x48] sm:$0xff]
    %v134 = vld [vmem:[%s4 + $0x50] sm:$0xff]
    %v135 = vld [vmem:[%s4 + $0x58] sm:$0xff]
    %v136 = vld [vmem:[%s4 + $0x60] sm:$0xff]
    %v137 = vld [vmem:[%s4 + $0x68] sm:$0xff]
    %v138 = vld [vmem:[%s4 + $0x70] sm:$0xff]
    %v139 = vld [vmem:[%s4 + $0x78] sm:$0xff]
    %v140 = vld [vmem:[%s5] sm:$0x1]
    %v142 = vlaneseq
    %v143 = vshrl.u32 %v142, 7
    %v144 = vsub.s32 0, %v143
    %v145 = vrot.slane %v140, %v144
    %v147 = vmul.f32 %v124, %v145
    %v148 = vmul.f32 %v125, %v145
    %v149 = vmul.f32 %v126, %v145
    %v150 = vmul.f32 %v127, %v145
    %v151 = vmul.f32 %v128, %v145
    %v152 = vmul.f32 %v129, %v145
    %v153 = vmul.f32 %v130, %v145
    %v154 = vmul.f32 %v131, %v145
    %v155 = vmul.f32 %v132, %v145
    %v156 = vmul.f32 %v133, %v145
    %v157 = vmul.f32 %v134, %v145
    %v158 = vmul.f32 %v135, %v145
    %v159 = vmul.f32 %v136, %v145
    %v160 = vmul.f32 %v137, %v145
    %v161 = vmul.f32 %v138, %v145
    %v162 = vmul.f32 %v139, %v145
    %v163 = vld [vmem:[%s6] sm:$0x1]
    %v165 = vlaneseq
    %v166 = vshrl.u32 %v165, 7
    %v167 = vsub.s32 0, %v166
    %v168 = vrot.slane %v163, %v167
    %v170 = vadd.f32 %v147, %v168
    %v171 = vadd.f32 %v148, %v168
    %v172 = vadd.f32 %v149, %v168
    %v173 = vadd.f32 %v150, %v168
    %v174 = vadd.f32 %v151, %v168
    %v175 = vadd.f32 %v152, %v168
    %v176 = vadd.f32 %v153, %v168
    %v177 = vadd.f32 %v154, %v168
    %v178 = vadd.f32 %v155, %v168
    %v179 = vadd.f32 %v156, %v168
    %v180 = vadd.f32 %v157, %v168
    %v181 = vadd.f32 %v158, %v168
    %v182 = vadd.f32 %v159, %v168
    %v183 = vadd.f32 %v160, %v168
    %v184 = vadd.f32 %v161, %v168
    %v185 = vadd.f32 %v162, %v168
    %v186 = vmax.f32 %v170, 0.0
    %v187 = vmax.f32 %v171, 0.0
    %v188 = vmax.f32 %v172, 0.0
    %v189 = vmax.f32 %v173, 0.0
    %v190 = vmax.f32 %v174, 0.0
    %v191 = vmax.f32 %v175, 0.0
    %v192 = vmax.f32 %v176, 0.0
    %v193 = vmax.f32 %v177, 0.0
    %v194 = vmax.f32 %v178, 0.0
    %v195 = vmax.f32 %v179, 0.0
    %v196 = vmax.f32 %v180, 0.0
    %v197 = vmax.f32 %v181, 0.0
    %v198 = vmax.f32 %v182, 0.0
    %v199 = vmax.f32 %v183, 0.0
    %v200 = vmax.f32 %v184, 0.0
    %v201 = vmax.f32 %v185, 0.0
    %v202 = vld [vmem:[%s7] sm:$0xff]
    %v203 = vld [vmem:[%s7 + $0x8] sm:$0xff]
    %v204 = vld [vmem:[%s7 + $0x10] sm:$0xff]
    %v205 = vld [vmem:[%s7 + $0x18] sm:$0xff]
    %v206 = vld [vmem:[%s7 + $0x20] sm:$0xff]
    %v207 = vld [vmem:[%s7 + $0x28] sm:$0xff]
    %v208 = vld [vmem:[%s7 + $0x30] sm:$0xff]
    %v209 = vld [vmem:[%s7 + $0x38] sm:$0xff]
    %v210 = vld [vmem:[%s7 + $0x40] sm:$0xff]
    %v211 = vld [vmem:[%s7 + $0x48] sm:$0xff]
    %v212 = vld [vmem:[%s7 + $0x50] sm:$0xff]
    %v213 = vld [vmem:[%s7 + $0x58] sm:$0xff]
    %v214 = vld [vmem:[%s7 + $0x60] sm:$0xff]
    %v215 = vld [vmem:[%s7 + $0x68] sm:$0xff]
    %v216 = vld [vmem:[%s7 + $0x70] sm:$0xff]
    %v217 = vld [vmem:[%s7 + $0x78] sm:$0xff]
    %218 = vmatprep.subr.mxu0 0.0
    %219 = vmatpush1.msra.mxu0 %v202
    %220 = vmatprep.subr.mxu0 0.0
    %221 = vmatpush1.msra.mxu0 %v203
    %222 = vmatprep.subr.mxu0 0.0
    %223 = vmatpush1.msra.mxu0 %v204
    %224 = vmatprep.subr.mxu0 0.0
    %225 = vmatpush1.msra.mxu0 %v205
    %226 = vmatprep.subr.mxu0 0.0
    %227 = vmatpush1.msra.mxu0 %v206
    %228 = vmatprep.subr.mxu0 0.0
    %229 = vmatpush1.msra.mxu0 %v207
    %230 = vmatprep.subr.mxu0 0.0
    %231 = vmatpush1.msra.mxu0 %v208
    %232 = vmatprep.subr.mxu0 0.0
    %233 = vmatpush1.msra.mxu0 %v209
    %234 = vmatprep.subr.mxu0 0.0
    %235 = vmatpush1.msra.mxu0 %v210
    %236 = vmatprep.subr.mxu0 0.0
    %237 = vmatpush1.msra.mxu0 %v211
    %238 = vmatprep.subr.mxu0 0.0
    %239 = vmatpush1.msra.mxu0 %v212
    %240 = vmatprep.subr.mxu0 0.0
    %241 = vmatpush1.msra.mxu0 %v213
    %242 = vmatprep.subr.mxu0 0.0
    %243 = vmatpush1.msra.mxu0 %v214
    %244 = vmatprep.subr.mxu0 0.0
    %245 = vmatpush1.msra.mxu0 %v215
    %246 = vmatprep.subr.mxu0 0.0
    %247 = vmatpush1.msra.mxu0 %v216
    %248 = vmatprep.subr.mxu0 0.0
    %249 = vmatpush1.msra.mxu0 %v217
    %250 = vmatprep.subr.mxu0 0.0
    %251 = vmatpush1.msra.mxu0 0.0
    %252 = vmatprep.subr.mxu0 0.0
    %253 = vmatpush1.msra.mxu0 0.0
    %254 = vmatprep.subr.mxu0 0.0
    %255 = vmatpush1.msra.mxu0 0.0
    %256 = vmatprep.subr.mxu0 0.0
    %257 = vmatpush1.msra.mxu0 0.0
    %258 = vmatprep.subr.mxu0 0.0
    %259 = vmatpush1.msra.mxu0 0.0
    %260 = vmatprep.subr.mxu0 0.0
    %261 = vmatpush1.msra.mxu0 0.0
    %262 = vmatprep.subr.mxu0 0.0
    %263 = vmatpush1.msra.mxu0 0.0
    %264 = vmatprep.subr.mxu0 0.0
    %265 = vmatpush1.msra.mxu0 0.0
    %266 = vmatprep.subr.mxu0 0.0
    %267 = vmatpush1.msra.mxu0 0.0
    %268 = vmatprep.subr.mxu0 0.0
    %269 = vmatpush1.msra.mxu0 0.0
    %270 = vmatprep.subr.mxu0 0.0
    %271 = vmatpush1.msra.mxu0 0.0
    %272 = vmatprep.subr.mxu0 0.0
    %273 = vmatpush1.msra.mxu0 0.0
    %274 = vmatprep.subr.mxu0 0.0
    %275 = vmatpush1.msra.mxu0 0.0
    %276 = vmatprep.subr.mxu0 0.0
    %277 = vmatpush1.msra.mxu0 0.0
    %278 = vmatprep.subr.mxu0 0.0
    %279 = vmatpush1.msra.mxu0 0.0
    %280 = vmatprep.subr.mxu0 0.0
    %281 = vmatpush1.msra.mxu0 0.0
    %282 = vmatprep.mubr.f32.mxu0 0.0
    %283 = vmatmul.mubr.f32.gmra.mrb[0].mxu0 %v186
    %v284 = vpop.f32.mrb[0].mxu0
    %v285 = vadd.f32 0.0, %v284
    %v286 = vpop.f32.mrb[0].mxu0
    %287 = vmatprep.mubr.f32.mxu0 0.0
    %288 = vmatmul.mubr.f32.gmra.mrb[0].mxu0 %v187
    %v289 = vpop.f32.mrb[0].mxu0
    %v290 = vadd.f32 0.0, %v289
    %v291 = vpop.f32.mrb[0].mxu0
    %292 = vmatprep.mubr.f32.mxu0 0.0
    %293 = vmatmul.mubr.f32.gmra.mrb[0].mxu0 %v188
    %v294 = vpop.f32.mrb[0].mxu0
    %v295 = vadd.f32 0.0, %v294
    %v296 = vpop.f32.mrb[0].mxu0
    %297 = vmatprep.mubr.f32.mxu0 0.0
    %298 = vmatmul.mubr.f32.gmra.mrb[0].mxu0 %v189
    %v299 = vpop.f32.mrb[0].mxu0
    %v300 = vadd.f32 0.0, %v299
    %v301 = vpop.f32.mrb[0].mxu0
    %302 = vmatprep.mubr.f32.mxu0 0.0
    %303 = vmatmul.mubr.f32.gmra.mrb[0].mxu0 %v190
    %v304 = vpop.f32.mrb[0].mxu0
    %v305 = vadd.f32 0.0, %v304
    %v306 = vpop.f32.mrb[0].mxu0
    %307 = vmatprep.mubr.f32.mxu0 0.0
    %308 = vmatmul.mubr.f32.gmra.mrb[0].mxu0 %v191
    %v309 = vpop.f32.mrb[0].mxu0
    %v310 = vadd.f32 0.0, %v309
    %v311 = vpop.f32.mrb[0].mxu0
    %312 = vmatprep.mubr.f32.mxu0 0.0
    %313 = vmatmul.mubr.f32.gmra.mrb[0].mxu0 %v192
    %v314 = vpop.f32.mrb[0].mxu0
    %v315 = vadd.f32 0.0, %v314
    %v316 = vpop.f32.mrb[0].mxu0
    %317 = vmatprep.mubr.f32.mxu0 0.0
    %318 = vmatmul.mubr.f32.gmra.mrb[0].mxu0 %v193
    %v319 = vpop.f32.mrb[0].mxu0
    %v320 = vadd.f32 0.0, %v319
    %v321 = vpop.f32.mrb[0].mxu0
    %322 = vmatprep.mubr.f32.mxu0 0.0
    %323 = vmatmul.mubr.f32.gmra.mrb[0].mxu0 %v194
    %v324 = vpop.f32.mrb[0].mxu0
    %v325 = vadd.f32 0.0, %v324
    %v326 = vpop.f32.mrb[0].mxu0
    %327 = vmatprep.mubr.f32.mxu0 0.0
    %328 = vmatmul.mubr.f32.gmra.mrb[0].mxu0 %v195
    %v329 = vpop.f32.mrb[0].mxu0
    %v330 = vadd.f32 0.0, %v329
    %v331 = vpop.f32.mrb[0].mxu0
    %332 = vmatprep.mubr.f32.mxu0 0.0
    %333 = vmatmul.mubr.f32.gmra.mrb[0].mxu0 %v196
    %v334 = vpop.f32.mrb[0].mxu0
    %v335 = vadd.f32 0.0, %v334
    %v336 = vpop.f32.mrb[0].mxu0
    %337 = vmatprep.mubr.f32.mxu0 0.0
    %338 = vmatmul.mubr.f32.gmra.mrb[0].mxu0 %v197
    %v339 = vpop.f32.mrb[0].mxu0
    %v340 = vadd.f32 0.0, %v339
    %v341 = vpop.f32.mrb[0].mxu0
    %342 = vmatprep.mubr.f32.mxu0 0.0
    %343 = vmatmul.mubr.f32.gmra.mrb[0].mxu0 %v198
    %v344 = vpop.f32.mrb[0].mxu0
    %v345 = vadd.f32 0.0, %v344
    %v346 = vpop.f32.mrb[0].mxu0
    %347 = vmatprep.mubr.f32.mxu0 0.0
    %348 = vmatmul.mubr.f32.gmra.mrb[0].mxu0 %v199
    %v349 = vpop.f32.mrb[0].mxu0
    %v350 = vadd.f32 0.0, %v349
    %v351 = vpop.f32.mrb[0].mxu0
    %352 = vmatprep.mubr.f32.mxu0 0.0
    %353 = vmatmul.mubr.f32.gmra.mrb[0].mxu0 %v200
    %v354 = vpop.f32.mrb[0].mxu0
    %v355 = vadd.f32 0.0, %v354
    %v356 = vpop.f32.mrb[0].mxu0
    %357 = vmatprep.mubr.f32.mxu0 0.0
    %358 = vmatmul.mubr.f32.gmra.mrb[0].mxu0 %v201
    %v359 = vpop.f32.mrb[0].mxu0
    %v360 = vadd.f32 0.0, %v359
    %v361 = vpop.f32.mrb[0].mxu0
    %362 = vdwg.mxu0
    %363 = vmatprep.subr.mxu0 0.0
    %364 = vmatpush1.msra.mxu0 %v108
    %365 = vmatprep.subr.mxu0 0.0
    %366 = vmatpush1.msra.mxu0 %v109
    %367 = vmatprep.subr.mxu0 0.0
    %368 = vmatpush1.msra.mxu0 %v110
    %369 = vmatprep.subr.mxu0 0.0
    %370 = vmatpush1.msra.mxu0 %v111
    %371 = vmatprep.subr.mxu0 0.0
    %372 = vmatpush1.msra.mxu0 %v112
    %373 = vmatprep.subr.mxu0 0.0
    %374 = vmatpush1.msra.mxu0 %v113
    %375 = vmatprep.subr.mxu0 0.0
    %376 = vmatpush1.msra.mxu0 %v114
    %377 = vmatprep.subr.mxu0 0.0
    %378 = vmatpush1.msra.mxu0 %v115
    %379 = vmatprep.subr.mxu0 0.0
    %380 = vmatpush1.msra.mxu0 %v116
    %381 = vmatprep.subr.mxu0 0.0
    %382 = vmatpush1.msra.mxu0 %v117
    %383 = vmatprep.subr.mxu0 0.0
    %384 = vmatpush1.msra.mxu0 %v118
    %385 = vmatprep.subr.mxu0 0.0
    %386 = vmatpush1.msra.mxu0 %v119
    %387 = vmatprep.subr.mxu0 0.0
    %388 = vmatpush1.msra.mxu0 %v120
    %389 = vmatprep.subr.mxu0 0.0
    %390 = vmatpush1.msra.mxu0 %v121
    %391 = vmatprep.subr.mxu0 0.0
    %392 = vmatpush1.msra.mxu0 %v122
    %393 = vmatprep.subr.mxu0 0.0
    %394 = vmatpush1.msra.mxu0 %v123
    %395 = vmatprep.subr.mxu0 0.0
    %396 = vmatpush1.msra.mxu0 0.0
    %397 = vmatprep.subr.mxu0 0.0
    %398 = vmatpush1.msra.mxu0 0.0
    %399 = vmatprep.subr.mxu0 0.0
    %400 = vmatpush1.msra.mxu0 0.0
    %401 = vmatprep.subr.mxu0 0.0
    %402 = vmatpush1.msra.mxu0 0.0
    %403 = vmatprep.subr.mxu0 0.0
    %404 = vmatpush1.msra.mxu0 0.0
    %405 = vmatprep.subr.mxu0 0.0
    %406 = vmatpush1.msra.mxu0 0.0
    %407 = vmatprep.subr.mxu0 0.0
    %408 = vmatpush1.msra.mxu0 0.0
    %409 = vmatprep.subr.mxu0 0.0
    %410 = vmatpush1.msra.mxu0 0.0
    %411 = vmatprep.subr.mxu0 0.0
    %412 = vmatpush1.msra.mxu0 0.0
    %413 = vmatprep.subr.mxu0 0.0
    %414 = vmatpush1.msra.mxu0 0.0
    %415 = vmatprep.subr.mxu0 0.0
    %416 = vmatpush1.msra.mxu0 0.0
    %417 = vmatprep.subr.mxu0 0.0
    %418 = vmatpush1.msra.mxu0 0.0
    %419 = vmatprep.subr.mxu0 0.0
    %420 = vmatpush1.msra.mxu0 0.0
    %421 = vmatprep.subr.mxu0 0.0
    %422 = vmatpush1.msra.mxu0 0.0
    %423 = vmatprep.subr.mxu0 0.0
    %424 = vmatpush1.msra.mxu0 0.0
    %425 = vmatprep.subr.mxu0 0.0
    %426 = vmatpush1.msra.mxu0 0.0
    %427 = vmatprep.mubr.f32.mxu0 0.0
    %428 = vmatmul.mubr.f32.gmra.mrb[0].mxu0 %v92
    %v429 = vpop.f32.mrb[0].mxu0
    %v430 = vadd.f32 %v285, %v429
    %v431 = vpop.f32.mrb[0].mxu0
    %432 = vmatprep.mubr.f32.mxu0 0.0
    %433 = vmatmul.mubr.f32.gmra.mrb[0].mxu0 %v93
    %v434 = vpop.f32.mrb[0].mxu0
    %v435 = vadd.f32 %v290, %v434
    %v436 = vpop.f32.mrb[0].mxu0
    %437 = vmatprep.mubr.f32.mxu0 0.0
    %438 = vmatmul.mubr.f32.gmra.mrb[0].mxu0 %v94
    %v439 = vpop.f32.mrb[0].mxu0
    %v440 = vadd.f32 %v295, %v439
    %v441 = vpop.f32.mrb[0].mxu0
    %442 = vmatprep.mubr.f32.mxu0 0.0
    %443 = vmatmul.mubr.f32.gmra.mrb[0].mxu0 %v95
    %v444 = vpop.f32.mrb[0].mxu0
    %v445 = vadd.f32 %v300, %v444
    %v446 = vpop.f32.mrb[0].mxu0
    %447 = vmatprep.mubr.f32.mxu0 0.0
    %448 = vmatmul.mubr.f32.gmra.mrb[0].mxu0 %v96
    %v449 = vpop.f32.mrb[0].mxu0
    %v450 = vadd.f32 %v305, %v449
    %v451 = vpop.f32.mrb[0].mxu0
    %452 = vmatprep.mubr.f32.mxu0 0.0
    %453 = vmatmul.mubr.f32.gmra.mrb[0].mxu0 %v97
    %v454 = vpop.f32.mrb[0].mxu0
    %v455 = vadd.f32 %v310, %v454
    %v456 = vpop.f32.mrb[0].mxu0
    %457 = vmatprep.mubr.f32.mxu0 0.0
    %458 = vmatmul.mubr.f32.gmra.mrb[0].mxu0 %v98
    %v459 = vpop.f32.mrb[0].mxu0
    %v460 = vadd.f32 %v315, %v459
    %v461 = vpop.f32.mrb[0].mxu0
    %462 = vmatprep.mubr.f32.mxu0 0.0
    %463 = vmatmul.mubr.f32.gmra.mrb[0].mxu0 %v99
    %v464 = vpop.f32.mrb[0].mxu0
    %v465 = vadd.f32 %v320, %v464
    %v466 = vpop.f32.mrb[0].mxu0
    %467 = vmatprep.mubr.f32.mxu0 0.0
    %468 = vmatmul.mubr.f32.gmra.mrb[0].mxu0 %v100
    %v469 = vpop.f32.mrb[0].mxu0
    %v470 = vadd.f32 %v325, %v469
    %v471 = vpop.f32.mrb[0].mxu0
    %472 = vmatprep.mubr.f32.mxu0 0.0
    %473 = vmatmul.mubr.f32.gmra.mrb[0].mxu0 %v101
    %v474 = vpop.f32.mrb[0].mxu0
    %v475 = vadd.f32 %v330, %v474
    %v476 = vpop.f32.mrb[0].mxu0
    %477 = vmatprep.mubr.f32.mxu0 0.0
    %478 = vmatmul.mubr.f32.gmra.mrb[0].mxu0 %v102
    %v479 = vpop.f32.mrb[0].mxu0
    %v480 = vadd.f32 %v335, %v479
    %v481 = vpop.f32.mrb[0].mxu0
    %482 = vmatprep.mubr.f32.mxu0 0.0
    %483 = vmatmul.mubr.f32.gmra.mrb[0].mxu0 %v103
    %v484 = vpop.f32.mrb[0].mxu0
    %v485 = vadd.f32 %v340, %v484
    %v486 = vpop.f32.mrb[0].mxu0
    %487 = vmatprep.mubr.f32.mxu0 0.0
    %488 = vmatmul.mubr.f32.gmra.mrb[0].mxu0 %v104
    %v489 = vpop.f32.mrb[0].mxu0
    %v490 = vadd.f32 %v345, %v489
    %v491 = vpop.f32.mrb[0].mxu0
    %492 = vmatprep.mubr.f32.mxu0 0.0
    %493 = vmatmul.mubr.f32.gmra.mrb[0].mxu0 %v105
    %v494 = vpop.f32.mrb[0].mxu0
    %v495 = vadd.f32 %v350, %v494
    %v496 = vpop.f32.mrb[0].mxu0
    %497 = vmatprep.mubr.f32.mxu0 0.0
    %498 = vmatmul.mubr.f32.gmra.mrb[0].mxu0 %v106
    %v499 = vpop.f32.mrb[0].mxu0
    %v500 = vadd.f32 %v355, %v499
    %v501 = vpop.f32.mrb[0].mxu0
    %502 = vmatprep.mubr.f32.mxu0 0.0
    %503 = vmatmul.mubr.f32.gmra.mrb[0].mxu0 %v107
    %v504 = vpop.f32.mrb[0].mxu0
    %v505 = vadd.f32 %v360, %v504
    %v506 = vpop.f32.mrb[0].mxu0
    %507 = vdwg.mxu0
    %508 = vst [vmem:[#allocation2] sm:$0xff] %v430
    %509 = vst [vmem:[#allocation2 + $0x8] sm:$0xff] %v435
    %510 = vst [vmem:[#allocation2 + $0x10] sm:$0xff] %v440
    %511 = vst [vmem:[#allocation2 + $0x18] sm:$0xff] %v445
    %512 = vst [vmem:[#allocation2 + $0x20] sm:$0xff] %v450
    %513 = vst [vmem:[#allocation2 + $0x28] sm:$0xff] %v455
    %514 = vst [vmem:[#allocation2 + $0x30] sm:$0xff] %v460
    %515 = vst [vmem:[#allocation2 + $0x38] sm:$0xff] %v465
    %516 = vst [vmem:[#allocation2 + $0x40] sm:$0xff] %v470
    %517 = vst [vmem:[#allocation2 + $0x48] sm:$0xff] %v475
    %518 = vst [vmem:[#allocation2 + $0x50] sm:$0xff] %v480
    %519 = vst [vmem:[#allocation2 + $0x58] sm:$0xff] %v485
    %520 = vst [vmem:[#allocation2 + $0x60] sm:$0xff] %v490
    %521 = vst [vmem:[#allocation2 + $0x68] sm:$0xff] %v495
    %522 = vst [vmem:[#allocation2 + $0x70] sm:$0xff] %v500
    %523 = vst [vmem:[#allocation2 + $0x78] sm:$0xff] %v505
    // Predicated region
    $region34: #{_preact_bottleneck_jit.5} parent=1 // pred_check
      _
    $region35: #{_preact_bottleneck_jit.5} parent=1 // pred_check_branch
      %525 = sbr.rel (0) target = $region37
    $region36: #{_preact_bottleneck_jit.5} parent=1 // pred_region
      %s527 = ssub.s32 2048, 2048
      %528 = vsyncadd [#allocation3], %s527
      %s529 = sshll.u32 [#allocation2], 4
      %s530 = int_to_ptr.vmem [resolvable:$true] %s529
      %535 = dma.vmem_to_hbm [thread:$0]  %s530, 2048, %s8, [#allocation3], 128, 128, 8
    $region37: #{_preact_bottleneck_jit.5} parent=1 // pred_fallthru
      _
    // Predicated region
    $region38: #{_preact_bottleneck_jit.5} parent=1 // pred_check
      _
    $region39: #{_preact_bottleneck_jit.5} parent=1 // pred_check_branch
      %537 = sbr.rel (0) target = $region41
    $region40: #{_preact_bottleneck_jit.5} parent=1 // pred_region
      %538 = dma.done [#allocation3], 2048
    $region41: #{_preact_bottleneck_jit.5} parent=1 // pred_fallthru
      _
    %539 = vsyncpa [#allocation3], 1

</llo_original>
